<compile_context>
chip_gen: v5e
topology: v5e:2x2
jax: 0.10.0
libtpu: 0.0.40
codegen_flags: <defaults>
</compile_context>

<pallas_src>
import functools

import jax
import jax.numpy as jnp
from jax import lax
from jax.experimental import pallas as pl
from jax.experimental.pallas import tpu as pltpu

EPS = 1e-5


def _down_res_block_kernel(
    x_ref,     # (R, W*Cin)          f32   R = N*H, lane index = x*Cin + ci
    wb1_ref,   # (3, W*Cin, W*Cout)  bf16  unpadded banded conv1 weights (per ky)
    wb2_ref,   # (3, W*Cout, W*Cout) bf16  unpadded banded conv2 weights (per ky)
    wsb_ref,   # (W*Cin, W*Cout)     bf16  block-diag 1x1 shortcut weights
    b1_ref,    # (1, W*Cout) f32  lane-tiled biases / BN params
    b2_ref,    # (1, W*Cout) f32
    bs_ref,    # (1, W*Cout) f32
    g1_ref,    # (1, W*Cin)  f32
    be1_ref,   # (1, W*Cin)  f32
    g2_ref,    # (1, W*Cout) f32
    be2_ref,   # (1, W*Cout) f32
    a1_ref,    # (W*Cin, W*Cin)   bf16  0/1 channel-fold operator (exact in bf16)
    a2_ref,    # (W*Cout, W*Cout) bf16
    out_ref,   # (R, W*Cout) f32  lane-dense output slab
    pad_ref,   # scratch (N, H+2, W*Cmax) f32   vertical-halo buffer, both convs
    st_ref,    # scratch (8, W*Cmax)      f32   BN stats staging rows
    *,
    n, h, w, cin, cout,
):
    rows = n * h
    lout = w * cout
    cmax = max(cin, cout)
    inv_m = 1.0 / float(n * h * w)     # elements per channel for BN stats

    # Hoisted: zero only the top/bottom halo rows, once, full lane width.
    zrow = jnp.zeros((n, 1, w * cmax), jnp.float32)
    pad_ref[:, 0:1, :] = zrow
    pad_ref[:, h + 1:h + 2, :] = zrow

    def bn_relu(v, a_ref, g_ref, be_ref, lc):
        # Training-mode batch stats in a fused single pass (sum + sum-of-sq).
        col_s = jnp.sum(v, axis=0, keepdims=True)           # (1, lc) f32
        col_ss = jnp.sum(v * v, axis=0, keepdims=True)      # (1, lc) f32
        # Exact per-channel fold over the W lane groups with ONE single-pass
        # bf16 MXU matmul: LHS rows = [s_hi, ss_hi, s_lo, ss_lo]; the hi/lo
        # split keeps the f32 column sums exact through bf16 MXU operands.
        s_hi = col_s.astype(jnp.bfloat16).astype(jnp.float32)
        ss_hi = col_ss.astype(jnp.bfloat16).astype(jnp.float32)
        st_ref[0:1, :lc] = s_hi
        st_ref[1:2, :lc] = ss_hi
        st_ref[2:3, :lc] = col_s - s_hi
        st_ref[3:4, :lc] = col_ss - ss_hi
        f4 = jnp.dot(st_ref[0:4, :lc].astype(jnp.bfloat16), a_ref[...],
                     preferred_element_type=jnp.float32)     # (4, lc)
        folded = (f4[0:2, :] + f4[2:4, :]) * inv_m           # [mean; E[x^2]]
        mean = folded[0:1, :]
        msq = folded[1:2, :]
        # Clamp: E[x^2] - mean^2 can round slightly negative (review note).
        var = jnp.maximum(msq - mean * mean, 0.0)
        scale = g_ref[...] * lax.rsqrt(var + EPS)
        shift = be_ref[...] - mean * scale
        return jnp.maximum(v * scale + shift, 0.0)

    def conv3x3(v, wb_ref, b_ref, c):
        # v: (R, W*c) f32.  3x3 SAME conv = 3 banded matmuls (one per ky); the
        # kx taps live inside the unpadded (W*c, W*Cout) band, so the LHS needs
        # no lane padding -- only the 1-row vertical halo staged in pad_ref.
        lc = w * c
        pad_ref[:, 1:h + 1, :lc] = v.reshape(n, h, lc)
        acc = jnp.zeros((rows, lout), jnp.float32)
        for ky in range(3):   # fixed tiny trip count
            lhs = pad_ref[:, ky:ky + h, :lc].reshape(rows, lc).astype(jnp.bfloat16)
            acc = acc + jnp.dot(lhs, wb_ref[ky],
                                preferred_element_type=jnp.float32)
        return acc + b_ref[...]

    act1 = bn_relu(x_ref[...], a1_ref, g1_ref, be1_ref, w * cin)   # (R, W*Cin)
    c1 = conv3x3(act1, wb1_ref, b1_ref, cin)                       # (R, W*Cout)
    act2 = bn_relu(c1, a2_ref, g2_ref, be2_ref, lout)              # (R, W*Cout)
    c2 = conv3x3(act2, wb2_ref, b2_ref, cout)                      # (R, W*Cout)

    # Shortcut (1x1 conv == block-diagonal matmul) computed last so its f32
    # result is not live across both BN+conv stages; x_ref stays in VMEM.
    shortcut = jnp.dot(x_ref[...].astype(jnp.bfloat16), wsb_ref[...],
                       preferred_element_type=jnp.float32) + bs_ref[...]

    out_ref[...] = c2 + shortcut       # lane-dense, unmasked full-width store


def _band_conv_weights(w_hwio, width):
    """(3,3,Ci,Co) HWIO weights -> (3, width*Ci, width*Co) UNPADDED banded mats.

    Block (x_in, x_out) of band[ky] holds w_hwio[ky, x_in - x_out + 1] when
    |x_in - x_out| <= 1 and zeros otherwise, so a 3x3 SAME conv becomes
    sum_ky rows_shifted_by_(ky-1) @ band[ky] with no lane (kx) padding.
    """
    kh, kw, _, _ = w_hwio.shape
    bands = []
    for ky in range(kh):
        band = sum(
            jnp.kron(jnp.eye(width, width, k=1 - dx, dtype=w_hwio.dtype),
                     w_hwio[ky, dx])
            for dx in range(kw))
        bands.append(band)
    return jnp.stack(bands)


@jax.jit
def down_res_block(x_nchw, params):
    """x_nchw: (N, Cin, H, W) f32 -> (N, Cout, H, W) f32 (DownResBlock forward)."""
    w1, b1, w2, b2, ws, bs, g1, be1, g2, be2 = params
    n, cin, h, w = x_nchw.shape
    cout = ws.shape[-1]
    cmax = max(cin, cout)
    rows, lin, lout = n * h, w * cin, w * cout

    # TODO(synk): fuse this NCHW -> lane-dense relayout (and the inverse below)
    # into the kernel or accept NHWC at the module boundary.
    x2d = jnp.transpose(x_nchw, (0, 2, 3, 1)).reshape(rows, lin)

    # Unpadded banded / block-diagonal weights, bf16 operands (f32 accum).
    wb1 = _band_conv_weights(w1, w).astype(jnp.bfloat16)
    wb2 = _band_conv_weights(w2, w).astype(jnp.bfloat16)
    wsb = jnp.kron(jnp.eye(w, dtype=ws.dtype), ws).astype(jnp.bfloat16)

    # 0/1 channel-fold operators A = kron(ones(W,W), eye(C)); exact in bf16.
    a1 = jnp.kron(jnp.ones((w, w), jnp.float32),
                  jnp.eye(cin, dtype=jnp.float32)).astype(jnp.bfloat16)
    a2 = jnp.kron(jnp.ones((w, w), jnp.float32),
                  jnp.eye(cout, dtype=jnp.float32)).astype(jnp.bfloat16)

    def lane_tile(v):  # (C,) -> (1, W*C), channel fastest (matches lane layout)
        return jnp.tile(v.astype(jnp.float32), w).reshape(1, -1)

    b1_t, b2_t, bs_t = lane_tile(b1), lane_tile(b2), lane_tile(bs)
    g1_t, be1_t = lane_tile(g1), lane_tile(be1)
    g2_t, be2_t = lane_tile(g2), lane_tile(be2)

    vmem = pl.BlockSpec(memory_space=pltpu.MemorySpace.VMEM)
    kernel = functools.partial(
        _down_res_block_kernel, n=n, h=h, w=w, cin=cin, cout=cout)

    out2d = pl.pallas_call(
        kernel,
        out_shape=jax.ShapeDtypeStruct((rows, lout), jnp.float32),
        in_specs=[vmem] * 13,
        out_specs=vmem,
        scratch_shapes=[pltpu.VMEM((n, h + 2, w * cmax), jnp.float32),
                        pltpu.VMEM((8, w * cmax), jnp.float32)],
        compiler_params=pltpu.CompilerParams(vmem_limit_bytes=32 * 1024 * 1024),
    )(x2d, wb1, wb2, wsb, b1_t, b2_t, bs_t, g1_t, be1_t, g2_t, be2_t, a1, a2)

    return jnp.transpose(out2d.reshape(n, h, w, cout), (0, 3, 1, 2))


def reference_down_res_block(x_nchw, params):
    """Pure-JAX reference (training-mode BN, SAME conv).

    Conv operands are cast to bf16 with f32 accumulation, mirroring the
    kernel's MXU dtype, so the comparison tolerance can stay tight.
    """
    w1, b1, w2, b2, ws, bs, g1, be1, g2, be2 = params
    x = jnp.transpose(x_nchw, (0, 2, 3, 1))
    dn = ("NHWC", "HWIO", "NHWC")

    def conv(inp, w_hwio, b, pad):
        y = lax.conv_general_dilated(
            inp.astype(jnp.bfloat16), w_hwio.astype(jnp.bfloat16),
            window_strides=(1, 1), padding=pad, dimension_numbers=dn,
            preferred_element_type=jnp.float32)
        return y + b.reshape(1, 1, 1, -1)

    def bn(inp, g, be):
        m = jnp.mean(inp, axis=(0, 1, 2), keepdims=True)
        v = jnp.mean((inp - m) ** 2, axis=(0, 1, 2), keepdims=True)
        return ((inp - m) * lax.rsqrt(v + EPS) * g.reshape(1, 1, 1, -1)
                + be.reshape(1, 1, 1, -1))

    x_id = conv(x, ws.reshape(1, 1, *ws.shape), bs, "VALID")
    t = jnp.maximum(bn(x, g1, be1), 0.0)
    t = conv(t, w1, b1, "SAME")
    t = jnp.maximum(bn(t, g2, be2), 0.0)
    t = conv(t, w2, b2, "SAME")
    return jnp.transpose(t + x_id, (0, 3, 1, 2))


def init_params(key, cin, cout):
    ks = jax.random.split(key, 8)
    w1 = 0.1 * jax.random.normal(ks[0], (3, 3, cin, cout), jnp.float32)
    b1 = 0.1 * jax.random.normal(ks[1], (cout,), jnp.float32)
    w2 = 0.1 * jax.random.normal(ks[2], (3, 3, cout, cout), jnp.float32)
    b2 = 0.1 * jax.random.normal(ks[3], (cout,), jnp.float32)
    ws = 0.1 * jax.random.normal(ks[4], (cin, cout), jnp.float32)
    bs = 0.1 * jax.random.normal(ks[5], (cout,), jnp.float32)
    g1 = 1.0 + 0.1 * jax.random.normal(ks[6], (cin,), jnp.float32)
    be1 = 0.1 * jax.random.normal(ks[7], (cin,), jnp.float32)
    g2 = jnp.ones((cout,), jnp.float32)
    be2 = jnp.zeros((cout,), jnp.float32)
    return (w1, b1, w2, b2, ws, bs, g1, be1, g2, be2)


if __name__ == "__main__":
    key = jax.random.PRNGKey(0)
    kx, kp = jax.random.split(key)

    N, Cin, H, W = 2, 4, 16, 16
    Cout = 8

    x = jax.random.normal(kx, (N, Cin, H, W), jnp.float32)
    params = init_params(kp, Cin, Cout)

    out = jax.block_until_ready(down_res_block(x, params))
    ref = reference_down_res_block(x, params)

    assert out.shape == (N, Cout, H, W), out.shape
    err = float(jnp.max(jnp.abs(out - ref)))
    # bf16 MXU operands (matched in the reference) + accumulation-order noise.
    assert jnp.allclose(out, ref, atol=5e-3, rtol=5e-3), err
    print("KERNEL_OK")
</pallas_src>

<mosaic_0001>
module attributes {stable_mosaic.version = 11 : i64} {
  func.func @_down_res_block_kernel(%arg0: memref<32x64xf32, #tpu.memory_space<vmem>>, %arg1: memref<3x64x128xbf16, #tpu.memory_space<vmem>>, %arg2: memref<3x128x128xbf16, #tpu.memory_space<vmem>>, %arg3: memref<64x128xbf16, #tpu.memory_space<vmem>>, %arg4: memref<1x128xf32, #tpu.memory_space<vmem>>, %arg5: memref<1x128xf32, #tpu.memory_space<vmem>>, %arg6: memref<1x128xf32, #tpu.memory_space<vmem>>, %arg7: memref<1x64xf32, #tpu.memory_space<vmem>>, %arg8: memref<1x64xf32, #tpu.memory_space<vmem>>, %arg9: memref<1x128xf32, #tpu.memory_space<vmem>>, %arg10: memref<1x128xf32, #tpu.memory_space<vmem>>, %arg11: memref<64x64xbf16, #tpu.memory_space<vmem>>, %arg12: memref<128x128xbf16, #tpu.memory_space<vmem>>, %arg13: memref<32x128xf32, #tpu.memory_space<vmem>>, %arg14: memref<2x18x128xf32, #tpu.memory_space<vmem>>, %arg15: memref<8x128xf32, #tpu.memory_space<vmem>>) attributes {dimension_semantics = [], scalar_prefetch = 0 : i64, scratch_operands = 2 : i64, tpu.core_type = #tpu.core_type<tc>} {
    %cst = arith.constant 0.000000e+00 : f32
    %0 = vector.broadcast %cst : f32 to vector<2x1x128xf32>
    %c0 = arith.constant 0 : index
    %c0_0 = arith.constant 0 : index
    %c0_1 = arith.constant 0 : index
    %1 = vector.load %arg14[%c0, %c0_0, %c0_1] : memref<2x18x128xf32, #tpu.memory_space<vmem>>, vector<2x1x128xf32>
    tpu.vector_store %arg14[%c0, %c0_0, %c0_1], %0 {strides = array<i32>} : memref<2x18x128xf32, #tpu.memory_space<vmem>>, vector<2x1x128xf32>,
    %c0_2 = arith.constant 0 : index
    %c17 = arith.constant 17 : index
    %c0_3 = arith.constant 0 : index
    %2 = vector.load %arg14[%c0_2, %c17, %c0_3] : memref<2x18x128xf32, #tpu.memory_space<vmem>>, vector<2x1x128xf32>
    tpu.vector_store %arg14[%c0_2, %c17, %c0_3], %0 {strides = array<i32>} : memref<2x18x128xf32, #tpu.memory_space<vmem>>, vector<2x1x128xf32>,
    %c0_4 = arith.constant 0 : index
    %c0_5 = arith.constant 0 : index
    %3 = vector.load %arg0[%c0_4, %c0_5] : memref<32x64xf32, #tpu.memory_space<vmem>>, vector<32x64xf32>
    %cst_6 = arith.constant dense<0.000000e+00> : vector<64xf32>
    %4 = vector.multi_reduction <add>, %3, %cst_6 [0] : vector<32x64xf32> to vector<64xf32>
    %5 = vector.shape_cast %4 : vector<64xf32> to vector<1x64xf32>
    %6 = arith.mulf %3, %3 : vector<32x64xf32>
    %cst_7 = arith.constant dense<0.000000e+00> : vector<64xf32>
    %7 = vector.multi_reduction <add>, %6, %cst_7 [0] : vector<32x64xf32> to vector<64xf32>
    %8 = vector.shape_cast %7 : vector<64xf32> to vector<1x64xf32>
    %9 = arith.truncf %5 : vector<1x64xf32> to vector<1x64xbf16>
    %10 = arith.extf %9 : vector<1x64xbf16> to vector<1x64xf32>
    %11 = arith.truncf %8 : vector<1x64xf32> to vector<1x64xbf16>
    %12 = arith.extf %11 : vector<1x64xbf16> to vector<1x64xf32>
    %c0_8 = arith.constant 0 : index
    %c0_9 = arith.constant 0 : index
    %13 = vector.load %arg15[%c0_8, %c0_9] : memref<8x128xf32, #tpu.memory_space<vmem>>, vector<1x64xf32>
    tpu.vector_store %arg15[%c0_8, %c0_9], %10 {strides = array<i32>} : memref<8x128xf32, #tpu.memory_space<vmem>>, vector<1x64xf32>,
    %c1 = arith.constant 1 : index
    %c0_10 = arith.constant 0 : index
    %14 = vector.load %arg15[%c1, %c0_10] : memref<8x128xf32, #tpu.memory_space<vmem>>, vector<1x64xf32>
    tpu.vector_store %arg15[%c1, %c0_10], %12 {strides = array<i32>} : memref<8x128xf32, #tpu.memory_space<vmem>>, vector<1x64xf32>,
    %15 = arith.subf %5, %10 : vector<1x64xf32>
    %c2 = arith.constant 2 : index
    %c0_11 = arith.constant 0 : index
    %16 = vector.load %arg15[%c2, %c0_11] : memref<8x128xf32, #tpu.memory_space<vmem>>, vector<1x64xf32>
    tpu.vector_store %arg15[%c2, %c0_11], %15 {strides = array<i32>} : memref<8x128xf32, #tpu.memory_space<vmem>>, vector<1x64xf32>,
    %17 = arith.subf %8, %12 : vector<1x64xf32>
    %c3 = arith.constant 3 : index
    %c0_12 = arith.constant 0 : index
    %18 = vector.load %arg15[%c3, %c0_12] : memref<8x128xf32, #tpu.memory_space<vmem>>, vector<1x64xf32>
    tpu.vector_store %arg15[%c3, %c0_12], %17 {strides = array<i32>} : memref<8x128xf32, #tpu.memory_space<vmem>>, vector<1x64xf32>,
    %c0_13 = arith.constant 0 : index
    %c0_14 = arith.constant 0 : index
    %19 = vector.load %arg15[%c0_13, %c0_14] : memref<8x128xf32, #tpu.memory_space<vmem>>, vector<4x64xf32>
    %20 = arith.truncf %19 : vector<4x64xf32> to vector<4x64xbf16>
    %c0_15 = arith.constant 0 : index
    %c0_16 = arith.constant 0 : index
    %21 = vector.load %arg11[%c0_15, %c0_16] : memref<64x64xbf16, #tpu.memory_space<vmem>>, vector<64x64xbf16>
    %cst_17 = arith.constant dense<0.000000e+00> : vector<4x64xf32>
    %22 = tpu.matmul %20, %21, %cst_17 {dimension_numbers = #tpu.dot_dimension_numbers<[1], [0], [0], [1], [0, 0, 1, 1], [], []>} : vector<4x64xbf16>, vector<64x64xbf16>, vector<4x64xf32> -> vector<4x64xf32>
    %23 = vector.extract_strided_slice %22 {offsets = [0, 0], sizes = [2, 64], strides = [1, 1]} : vector<4x64xf32> to vector<2x64xf32>
    %24 = vector.extract_strided_slice %22 {offsets = [2, 0], sizes = [2, 64], strides = [1, 1]} : vector<4x64xf32> to vector<2x64xf32>
    %25 = arith.addf %23, %24 : vector<2x64xf32>
    %cst_18 = arith.constant 0.001953125 : f32
    %26 = vector.broadcast %cst_18 : f32 to vector<2x64xf32>
    %27 = arith.mulf %25, %26 : vector<2x64xf32>
    %28 = vector.extract_strided_slice %27 {offsets = [0, 0], sizes = [1, 64], strides = [1, 1]} : vector<2x64xf32> to vector<1x64xf32>
    %29 = vector.extract_strided_slice %27 {offsets = [1, 0], sizes = [1, 64], strides = [1, 1]} : vector<2x64xf32> to vector<1x64xf32>
    %30 = arith.mulf %28, %28 : vector<1x64xf32>
    %31 = arith.subf %29, %30 : vector<1x64xf32>
    %cst_19 = arith.constant 0.000000e+00 : f32
    %32 = vector.broadcast %cst_19 : f32 to vector<1x64xf32>
    %33 = arith.maximumf %31, %32 : vector<1x64xf32>
    %c0_20 = arith.constant 0 : index
    %c0_21 = arith.constant 0 : index
    %34 = vector.load %arg7[%c0_20, %c0_21] : memref<1x64xf32, #tpu.memory_space<vmem>>, vector<1x64xf32>
    %cst_22 = arith.constant 9.99999974E-6 : f32
    %35 = vector.broadcast %cst_22 : f32 to vector<1x64xf32>
    %36 = arith.addf %33, %35 : vector<1x64xf32>
    %37 = math.rsqrt %36 : vector<1x64xf32>
    %38 = arith.mulf %34, %37 : vector<1x64xf32>
    %c0_23 = arith.constant 0 : index
    %c0_24 = arith.constant 0 : index
    %39 = vector.load %arg8[%c0_23, %c0_24] : memref<1x64xf32, #tpu.memory_space<vmem>>, vector<1x64xf32>
    %40 = arith.mulf %28, %38 : vector<1x64xf32>
    %41 = arith.subf %39, %40 : vector<1x64xf32>
    %42 = vector.broadcast %38 : vector<1x64xf32> to vector<32x64xf32>
    %43 = arith.mulf %3, %42 : vector<32x64xf32>
    %44 = vector.broadcast %41 : vector<1x64xf32> to vector<32x64xf32>
    %45 = arith.addf %43, %44 : vector<32x64xf32>
    %cst_25 = arith.constant 0.000000e+00 : f32
    %46 = vector.broadcast %cst_25 : f32 to vector<32x64xf32>
    %47 = arith.maximumf %45, %46 : vector<32x64xf32>
    %48 = vector.shape_cast %47 : vector<32x64xf32> to vector<2x16x64xf32>
    %c0_26 = arith.constant 0 : index
    %c1_27 = arith.constant 1 : index
    %c0_28 = arith.constant 0 : index
    %49 = vector.load %arg14[%c0_26, %c1_27, %c0_28] : memref<2x18x128xf32, #tpu.memory_space<vmem>>, vector<2x16x64xf32>
    tpu.vector_store %arg14[%c0_26, %c1_27, %c0_28], %48 {strides = array<i32>} : memref<2x18x128xf32, #tpu.memory_space<vmem>>, vector<2x16x64xf32>,
    %cst_29 = arith.constant 0.000000e+00 : f32
    %50 = vector.broadcast %cst_29 : f32 to vector<32x128xf32>
    %c0_30 = arith.constant 0 : index
    %c0_31 = arith.constant 0 : index
    %c0_32 = arith.constant 0 : index
    %51 = vector.load %arg14[%c0_30, %c0_31, %c0_32] : memref<2x18x128xf32, #tpu.memory_space<vmem>>, vector<2x16x64xf32>
    %52 = vector.shape_cast %51 : vector<2x16x64xf32> to vector<32x64xf32>
    %53 = arith.truncf %52 : vector<32x64xf32> to vector<32x64xbf16>
    %c0_33 = arith.constant 0 : index
    %c0_34 = arith.constant 0 : index
    %c0_35 = arith.constant 0 : index
    %54 = vector.load %arg1[%c0_33, %c0_34, %c0_35] : memref<3x64x128xbf16, #tpu.memory_space<vmem>>, vector<1x64x128xbf16>
    %55 = vector.shape_cast %54 : vector<1x64x128xbf16> to vector<64x128xbf16>
    %cst_36 = arith.constant dense<0.000000e+00> : vector<32x128xf32>
    %56 = tpu.matmul %53, %55, %cst_36 {dimension_numbers = #tpu.dot_dimension_numbers<[1], [0], [0], [1], [0, 0, 1, 1], [], []>} : vector<32x64xbf16>, vector<64x128xbf16>, vector<32x128xf32> -> vector<32x128xf32>
    %57 = arith.addf %50, %56 : vector<32x128xf32>
    %c0_37 = arith.constant 0 : index
    %c1_38 = arith.constant 1 : index
    %c0_39 = arith.constant 0 : index
    %58 = vector.load %arg14[%c0_37, %c1_38, %c0_39] : memref<2x18x128xf32, #tpu.memory_space<vmem>>, vector<2x16x64xf32>
    %59 = vector.shape_cast %58 : vector<2x16x64xf32> to vector<32x64xf32>
    %60 = arith.truncf %59 : vector<32x64xf32> to vector<32x64xbf16>
    %c1_40 = arith.constant 1 : index
    %c0_41 = arith.constant 0 : index
    %c0_42 = arith.constant 0 : index
    %61 = vector.load %arg1[%c1_40, %c0_41, %c0_42] : memref<3x64x128xbf16, #tpu.memory_space<vmem>>, vector<1x64x128xbf16>
    %62 = vector.shape_cast %61 : vector<1x64x128xbf16> to vector<64x128xbf16>
    %cst_43 = arith.constant dense<0.000000e+00> : vector<32x128xf32>
    %63 = tpu.matmul %60, %62, %cst_43 {dimension_numbers = #tpu.dot_dimension_numbers<[1], [0], [0], [1], [0, 0, 1, 1], [], []>} : vector<32x64xbf16>, vector<64x128xbf16>, vector<32x128xf32> -> vector<32x128xf32>
    %64 = arith.addf %57, %63 : vector<32x128xf32>
    %c0_44 = arith.constant 0 : index
    %c2_45 = arith.constant 2 : index
    %c0_46 = arith.constant 0 : index
    %65 = vector.load %arg14[%c0_44, %c2_45, %c0_46] : memref<2x18x128xf32, #tpu.memory_space<vmem>>, vector<2x16x64xf32>
    %66 = vector.shape_cast %65 : vector<2x16x64xf32> to vector<32x64xf32>
    %67 = arith.truncf %66 : vector<32x64xf32> to vector<32x64xbf16>
    %c2_47 = arith.constant 2 : index
    %c0_48 = arith.constant 0 : index
    %c0_49 = arith.constant 0 : index
    %68 = vector.load %arg1[%c2_47, %c0_48, %c0_49] : memref<3x64x128xbf16, #tpu.memory_space<vmem>>, vector<1x64x128xbf16>
    %69 = vector.shape_cast %68 : vector<1x64x128xbf16> to vector<64x128xbf16>
    %cst_50 = arith.constant dense<0.000000e+00> : vector<32x128xf32>
    %70 = tpu.matmul %67, %69, %cst_50 {dimension_numbers = #tpu.dot_dimension_numbers<[1], [0], [0], [1], [0, 0, 1, 1], [], []>} : vector<32x64xbf16>, vector<64x128xbf16>, vector<32x128xf32> -> vector<32x128xf32>
    %71 = arith.addf %64, %70 : vector<32x128xf32>
    %c0_51 = arith.constant 0 : index
    %c0_52 = arith.constant 0 : index
    %72 = vector.load %arg4[%c0_51, %c0_52] : memref<1x128xf32, #tpu.memory_space<vmem>>, vector<1x128xf32>
    %73 = vector.broadcast %72 : vector<1x128xf32> to vector<32x128xf32>
    %74 = arith.addf %71, %73 : vector<32x128xf32>
    %cst_53 = arith.constant dense<0.000000e+00> : vector<128xf32>
    %75 = vector.multi_reduction <add>, %74, %cst_53 [0] : vector<32x128xf32> to vector<128xf32>
    %76 = vector.shape_cast %75 : vector<128xf32> to vector<1x128xf32>
    %77 = arith.mulf %74, %74 : vector<32x128xf32>
    %cst_54 = arith.constant dense<0.000000e+00> : vector<128xf32>
    %78 = vector.multi_reduction <add>, %77, %cst_54 [0] : vector<32x128xf32> to vector<128xf32>
    %79 = vector.shape_cast %78 : vector<128xf32> to vector<1x128xf32>
    %80 = arith.truncf %76 : vector<1x128xf32> to vector<1x128xbf16>
    %81 = arith.extf %80 : vector<1x128xbf16> to vector<1x128xf32>
    %82 = arith.truncf %79 : vector<1x128xf32> to vector<1x128xbf16>
    %83 = arith.extf %82 : vector<1x128xbf16> to vector<1x128xf32>
    %c0_55 = arith.constant 0 : index
    %c0_56 = arith.constant 0 : index
    %84 = vector.load %arg15[%c0_55, %c0_56] : memref<8x128xf32, #tpu.memory_space<vmem>>, vector<1x128xf32>
    tpu.vector_store %arg15[%c0_55, %c0_56], %81 {strides = array<i32>} : memref<8x128xf32, #tpu.memory_space<vmem>>, vector<1x128xf32>,
    %c1_57 = arith.constant 1 : index
    %c0_58 = arith.constant 0 : index
    %85 = vector.load %arg15[%c1_57, %c0_58] : memref<8x128xf32, #tpu.memory_space<vmem>>, vector<1x128xf32>
    tpu.vector_store %arg15[%c1_57, %c0_58], %83 {strides = array<i32>} : memref<8x128xf32, #tpu.memory_space<vmem>>, vector<1x128xf32>,
    %86 = arith.subf %76, %81 : vector<1x128xf32>
    %c2_59 = arith.constant 2 : index
    %c0_60 = arith.constant 0 : index
    %87 = vector.load %arg15[%c2_59, %c0_60] : memref<8x128xf32, #tpu.memory_space<vmem>>, vector<1x128xf32>
    tpu.vector_store %arg15[%c2_59, %c0_60], %86 {strides = array<i32>} : memref<8x128xf32, #tpu.memory_space<vmem>>, vector<1x128xf32>,
    %88 = arith.subf %79, %83 : vector<1x128xf32>
    %c3_61 = arith.constant 3 : index
    %c0_62 = arith.constant 0 : index
    %89 = vector.load %arg15[%c3_61, %c0_62] : memref<8x128xf32, #tpu.memory_space<vmem>>, vector<1x128xf32>
    tpu.vector_store %arg15[%c3_61, %c0_62], %88 {strides = array<i32>} : memref<8x128xf32, #tpu.memory_space<vmem>>, vector<1x128xf32>,
    %c0_63 = arith.constant 0 : index
    %c0_64 = arith.constant 0 : index
    %90 = vector.load %arg15[%c0_63, %c0_64] : memref<8x128xf32, #tpu.memory_space<vmem>>, vector<4x128xf32>
    %91 = arith.truncf %90 : vector<4x128xf32> to vector<4x128xbf16>
    %c0_65 = arith.constant 0 : index
    %c0_66 = arith.constant 0 : index
    %92 = vector.load %arg12[%c0_65, %c0_66] : memref<128x128xbf16, #tpu.memory_space<vmem>>, vector<128x128xbf16>
    %cst_67 = arith.constant dense<0.000000e+00> : vector<4x128xf32>
    %93 = tpu.matmul %91, %92, %cst_67 {dimension_numbers = #tpu.dot_dimension_numbers<[1], [0], [0], [1], [0, 0, 1, 1], [], []>} : vector<4x128xbf16>, vector<128x128xbf16>, vector<4x128xf32> -> vector<4x128xf32>
    %94 = vector.extract_strided_slice %93 {offsets = [0, 0], sizes = [2, 128], strides = [1, 1]} : vector<4x128xf32> to vector<2x128xf32>
    %95 = vector.extract_strided_slice %93 {offsets = [2, 0], sizes = [2, 128], strides = [1, 1]} : vector<4x128xf32> to vector<2x128xf32>
    %96 = arith.addf %94, %95 : vector<2x128xf32>
    %cst_68 = arith.constant 0.001953125 : f32
    %97 = vector.broadcast %cst_68 : f32 to vector<2x128xf32>
    %98 = arith.mulf %96, %97 : vector<2x128xf32>
    %99 = vector.extract_strided_slice %98 {offsets = [0, 0], sizes = [1, 128], strides = [1, 1]} : vector<2x128xf32> to vector<1x128xf32>
    %100 = vector.extract_strided_slice %98 {offsets = [1, 0], sizes = [1, 128], strides = [1, 1]} : vector<2x128xf32> to vector<1x128xf32>
    %101 = arith.mulf %99, %99 : vector<1x128xf32>
    %102 = arith.subf %100, %101 : vector<1x128xf32>
    %cst_69 = arith.constant 0.000000e+00 : f32
    %103 = vector.broadcast %cst_69 : f32 to vector<1x128xf32>
    %104 = arith.maximumf %102, %103 : vector<1x128xf32>
    %c0_70 = arith.constant 0 : index
    %c0_71 = arith.constant 0 : index
    %105 = vector.load %arg9[%c0_70, %c0_71] : memref<1x128xf32, #tpu.memory_space<vmem>>, vector<1x128xf32>
    %cst_72 = arith.constant 9.99999974E-6 : f32
    %106 = vector.broadcast %cst_72 : f32 to vector<1x128xf32>
    %107 = arith.addf %104, %106 : vector<1x128xf32>
    %108 = math.rsqrt %107 : vector<1x128xf32>
    %109 = arith.mulf %105, %108 : vector<1x128xf32>
    %c0_73 = arith.constant 0 : index
    %c0_74 = arith.constant 0 : index
    %110 = vector.load %arg10[%c0_73, %c0_74] : memref<1x128xf32, #tpu.memory_space<vmem>>, vector<1x128xf32>
    %111 = arith.mulf %99, %109 : vector<1x128xf32>
    %112 = arith.subf %110, %111 : vector<1x128xf32>
    %113 = vector.broadcast %109 : vector<1x128xf32> to vector<32x128xf32>
    %114 = arith.mulf %74, %113 : vector<32x128xf32>
    %115 = vector.broadcast %112 : vector<1x128xf32> to vector<32x128xf32>
    %116 = arith.addf %114, %115 : vector<32x128xf32>
    %cst_75 = arith.constant 0.000000e+00 : f32
    %117 = vector.broadcast %cst_75 : f32 to vector<32x128xf32>
    %118 = arith.maximumf %116, %117 : vector<32x128xf32>
    %119 = vector.shape_cast %118 : vector<32x128xf32> to vector<2x16x128xf32>
    %c0_76 = arith.constant 0 : index
    %c1_77 = arith.constant 1 : index
    %c0_78 = arith.constant 0 : index
    %120 = vector.load %arg14[%c0_76, %c1_77, %c0_78] : memref<2x18x128xf32, #tpu.memory_space<vmem>>, vector<2x16x128xf32>
    tpu.vector_store %arg14[%c0_76, %c1_77, %c0_78], %119 {strides = array<i32>} : memref<2x18x128xf32, #tpu.memory_space<vmem>>, vector<2x16x128xf32>,
    %cst_79 = arith.constant 0.000000e+00 : f32
    %121 = vector.broadcast %cst_79 : f32 to vector<32x128xf32>
    %c0_80 = arith.constant 0 : index
    %c0_81 = arith.constant 0 : index
    %c0_82 = arith.constant 0 : index
    %122 = vector.load %arg14[%c0_80, %c0_81, %c0_82] : memref<2x18x128xf32, #tpu.memory_space<vmem>>, vector<2x16x128xf32>
    %123 = vector.shape_cast %122 : vector<2x16x128xf32> to vector<32x128xf32>
    %124 = arith.truncf %123 : vector<32x128xf32> to vector<32x128xbf16>
    %c0_83 = arith.constant 0 : index
    %c0_84 = arith.constant 0 : index
    %c0_85 = arith.constant 0 : index
    %125 = vector.load %arg2[%c0_83, %c0_84, %c0_85] : memref<3x128x128xbf16, #tpu.memory_space<vmem>>, vector<1x128x128xbf16>
    %126 = vector.shape_cast %125 : vector<1x128x128xbf16> to vector<128x128xbf16>
    %cst_86 = arith.constant dense<0.000000e+00> : vector<32x128xf32>
    %127 = tpu.matmul %124, %126, %cst_86 {dimension_numbers = #tpu.dot_dimension_numbers<[1], [0], [0], [1], [0, 0, 1, 1], [], []>} : vector<32x128xbf16>, vector<128x128xbf16>, vector<32x128xf32> -> vector<32x128xf32>
    %128 = arith.addf %121, %127 : vector<32x128xf32>
    %c0_87 = arith.constant 0 : index
    %c1_88 = arith.constant 1 : index
    %c0_89 = arith.constant 0 : index
    %129 = vector.load %arg14[%c0_87, %c1_88, %c0_89] : memref<2x18x128xf32, #tpu.memory_space<vmem>>, vector<2x16x128xf32>
    %130 = vector.shape_cast %129 : vector<2x16x128xf32> to vector<32x128xf32>
    %131 = arith.truncf %130 : vector<32x128xf32> to vector<32x128xbf16>
    %c1_90 = arith.constant 1 : index
    %c0_91 = arith.constant 0 : index
    %c0_92 = arith.constant 0 : index
    %132 = vector.load %arg2[%c1_90, %c0_91, %c0_92] : memref<3x128x128xbf16, #tpu.memory_space<vmem>>, vector<1x128x128xbf16>
    %133 = vector.shape_cast %132 : vector<1x128x128xbf16> to vector<128x128xbf16>
    %cst_93 = arith.constant dense<0.000000e+00> : vector<32x128xf32>
    %134 = tpu.matmul %131, %133, %cst_93 {dimension_numbers = #tpu.dot_dimension_numbers<[1], [0], [0], [1], [0, 0, 1, 1], [], []>} : vector<32x128xbf16>, vector<128x128xbf16>, vector<32x128xf32> -> vector<32x128xf32>
    %135 = arith.addf %128, %134 : vector<32x128xf32>
    %c0_94 = arith.constant 0 : index
    %c2_95 = arith.constant 2 : index
    %c0_96 = arith.constant 0 : index
    %136 = vector.load %arg14[%c0_94, %c2_95, %c0_96] : memref<2x18x128xf32, #tpu.memory_space<vmem>>, vector<2x16x128xf32>
    %137 = vector.shape_cast %136 : vector<2x16x128xf32> to vector<32x128xf32>
    %138 = arith.truncf %137 : vector<32x128xf32> to vector<32x128xbf16>
    %c2_97 = arith.constant 2 : index
    %c0_98 = arith.constant 0 : index
    %c0_99 = arith.constant 0 : index
    %139 = vector.load %arg2[%c2_97, %c0_98, %c0_99] : memref<3x128x128xbf16, #tpu.memory_space<vmem>>, vector<1x128x128xbf16>
    %140 = vector.shape_cast %139 : vector<1x128x128xbf16> to vector<128x128xbf16>
    %cst_100 = arith.constant dense<0.000000e+00> : vector<32x128xf32>
    %141 = tpu.matmul %138, %140, %cst_100 {dimension_numbers = #tpu.dot_dimension_numbers<[1], [0], [0], [1], [0, 0, 1, 1], [], []>} : vector<32x128xbf16>, vector<128x128xbf16>, vector<32x128xf32> -> vector<32x128xf32>
    %142 = arith.addf %135, %141 : vector<32x128xf32>
    %c0_101 = arith.constant 0 : index
    %c0_102 = arith.constant 0 : index
    %143 = vector.load %arg5[%c0_101, %c0_102] : memref<1x128xf32, #tpu.memory_space<vmem>>, vector<1x128xf32>
    %144 = vector.broadcast %143 : vector<1x128xf32> to vector<32x128xf32>
    %145 = arith.addf %142, %144 : vector<32x128xf32>
    %c0_103 = arith.constant 0 : index
    %c0_104 = arith.constant 0 : index
    %146 = vector.load %arg0[%c0_103, %c0_104] : memref<32x64xf32, #tpu.memory_space<vmem>>, vector<32x64xf32>
    %147 = arith.truncf %146 : vector<32x64xf32> to vector<32x64xbf16>
    %c0_105 = arith.constant 0 : index
    %c0_106 = arith.constant 0 : index
    %148 = vector.load %arg3[%c0_105, %c0_106] : memref<64x128xbf16, #tpu.memory_space<vmem>>, vector<64x128xbf16>
    %cst_107 = arith.constant dense<0.000000e+00> : vector<32x128xf32>
    %149 = tpu.matmul %147, %148, %cst_107 {dimension_numbers = #tpu.dot_dimension_numbers<[1], [0], [0], [1], [0, 0, 1, 1], [], []>} : vector<32x64xbf16>, vector<64x128xbf16>, vector<32x128xf32> -> vector<32x128xf32>
    %c0_108 = arith.constant 0 : index
    %c0_109 = arith.constant 0 : index
    %150 = vector.load %arg6[%c0_108, %c0_109] : memref<1x128xf32, #tpu.memory_space<vmem>>, vector<1x128xf32>
    %151 = vector.broadcast %150 : vector<1x128xf32> to vector<32x128xf32>
    %152 = arith.addf %149, %151 : vector<32x128xf32>
    %153 = arith.addf %145, %152 : vector<32x128xf32>
    %c0_110 = arith.constant 0 : index
    %c0_111 = arith.constant 0 : index
    %154 = vector.load %arg13[%c0_110, %c0_111] : memref<32x128xf32, #tpu.memory_space<vmem>>, vector<32x128xf32>
    tpu.vector_store %arg13[%c0_110, %c0_111], %153 {strides = array<i32>} : memref<32x128xf32, #tpu.memory_space<vmem>>, vector<32x128xf32>,
    return
  }
}

</mosaic_0001>

<llo_original>
// kernel: tile.38
$region0: #{tile.38}
  #allocation0 [shape = 's32[1]{0}', space=sflag, size = 0x4, scoped, tag = 'scoped memory for tile.38']
  %s0 = inlined_call_operand.vmem [shape: f32[8], index: 0, kind: input, shape index: {}]
  %s1 = inlined_call_operand.vmem [shape: f32[16,8], index: 1, kind: output, shape index: {}]
  // Predicated region
  $region2: #{tile.38} parent=0 // pred_check
    _
  $region3: #{tile.38} parent=0 // pred_check_branch
    %3 = sbr.rel (0) target = $region5
  $region4: #{tile.38} parent=0 // pred_region
    _
  $region5: #{tile.38} parent=0 // pred_fallthru
    _
  %v4 = vld [vmem:[%s0] ss:$0 sm:$0xff]
  %5 = vst [vmem:[%s1] sm:$0xff] %v4
  %s6 = scalar_lea.vmem %s1, 8
  %7 = vst [vmem:[%s6] sm:$0xff] %v4

// kernel: tile.39
$region0: #{tile.39}
  %s0 = inlined_call_operand.vmem [shape: f32[16,8], index: 0, kind: input, shape index: {}]
  %s1 = inlined_call_operand.vmem [shape: f32[1,128], index: 1, kind: output, shape index: {}]
  $region1: #{tile.39} parent=0
    #allocation0 [shape = 'u8[4096]{0}', space=vmem, size = 0x1000, scoped, tag = 'scoped mem for output reshape']
    %v2 = vld [vmem:[%s0] sm:$0x1]
    %vm3 = vcmask 64512
    %4 = vst.msk [vmem:[#allocation0] sm:$0x1] %vm3, %v2
    %s5 = scalar_lea.vmem %s0, 15
    %v6 = vld [vmem:[%s5] sm:$0x1]
    %7 = vrot.lane.b32.xlu0 %v6, 120
    %v8 = vpop.permute.xlu0 %7
    %vm9 = vcmask 1048512
    %10 = vst.msk [vmem:[#allocation0] sm:$0x1] %vm9, %v8
    %s11 = scalar_lea.vmem %s0, 14
    %v12 = vld [vmem:[%s11] sm:$0x1]
    %13 = vrot.lane.b32.xlu0 %v12, 112
    %v14 = vpop.permute.xlu0 %13
    %vm15 = vcmask 982912
    %16 = vst.msk [vmem:[#allocation0] sm:$0x1] %vm15, %v14
    %s17 = scalar_lea.vmem %s0, 13
    %v18 = vld [vmem:[%s17] sm:$0x1]
    %19 = vrot.lane.b32.xlu0 %v18, 104
    %v20 = vpop.permute.xlu0 %19
    %vm21 = vcmask 917312
    %22 = vst.msk [vmem:[#allocation0] sm:$0x1] %vm21, %v20
    %s23 = scalar_lea.vmem %s0, 12
    %v24 = vld [vmem:[%s23] sm:$0x1]
    %25 = vrot.lane.b32.xlu0 %v24, 96
    %v26 = vpop.permute.xlu0 %25
    %vm27 = vcmask 851712
    %28 = vst.msk [vmem:[#allocation0] sm:$0x1] %vm27, %v26
    %s29 = scalar_lea.vmem %s0, 11
    %v30 = vld [vmem:[%s29] sm:$0x1]
    %31 = vrot.lane.b32.xlu0 %v30, 88
    %v32 = vpop.permute.xlu0 %31
    %vm33 = vcmask 786112
    %34 = vst.msk [vmem:[#allocation0] sm:$0x1] %vm33, %v32
    %s35 = scalar_lea.vmem %s0, 10
    %v36 = vld [vmem:[%s35] sm:$0x1]
    %37 = vrot.lane.b32.xlu0 %v36, 80
    %v38 = vpop.permute.xlu0 %37
    %vm39 = vcmask 720512
    %40 = vst.msk [vmem:[#allocation0] sm:$0x1] %vm39, %v38
    %s41 = scalar_lea.vmem %s0, 9
    %v42 = vld [vmem:[%s41] sm:$0x1]
    %43 = vrot.lane.b32.xlu0 %v42, 72
    %v44 = vpop.permute.xlu0 %43
    %vm45 = vcmask 654912
    %46 = vst.msk [vmem:[#allocation0] sm:$0x1] %vm45, %v44
    %s47 = scalar_lea.vmem %s0, 8
    %v48 = vld [vmem:[%s47] sm:$0x1]
    %49 = vrot.lane.b32.xlu0 %v48, 64
    %v50 = vpop.permute.xlu0 %49
    %vm51 = vcmask 589312
    %52 = vst.msk [vmem:[#allocation0] sm:$0x1] %vm51, %v50
    %s53 = scalar_lea.vmem %s0, 7
    %v54 = vld [vmem:[%s53] sm:$0x1]
    %55 = vrot.lane.b32.xlu0 %v54, 56
    %v56 = vpop.permute.xlu0 %55
    %vm57 = vcmask 523712
    %58 = vst.msk [vmem:[#allocation0] sm:$0x1] %vm57, %v56
    %s59 = scalar_lea.vmem %s0, 6
    %v60 = vld [vmem:[%s59] sm:$0x1]
    %61 = vrot.lane.b32.xlu0 %v60, 48
    %v62 = vpop.permute.xlu0 %61
    %vm63 = vcmask 458112
    %64 = vst.msk [vmem:[#allocation0] sm:$0x1] %vm63, %v62
    %s65 = scalar_lea.vmem %s0, 5
    %v66 = vld [vmem:[%s65] sm:$0x1]
    %67 = vrot.lane.b32.xlu0 %v66, 40
    %v68 = vpop.permute.xlu0 %67
    %vm69 = vcmask 392512
    %70 = vst.msk [vmem:[#allocation0] sm:$0x1] %vm69, %v68
    %s71 = scalar_lea.vmem %s0, 4
    %v72 = vld [vmem:[%s71] sm:$0x1]
    %73 = vrot.lane.b32.xlu0 %v72, 32
    %v74 = vpop.permute.xlu0 %73
    %vm75 = vcmask 326912
    %76 = vst.msk [vmem:[#allocation0] sm:$0x1] %vm75, %v74
    %s77 = scalar_lea.vmem %s0, 3
    %v78 = vld [vmem:[%s77] sm:$0x1]
    %79 = vrot.lane.b32.xlu0 %v78, 24
    %v80 = vpop.permute.xlu0 %79
    %vm81 = vcmask 261312
    %82 = vst.msk [vmem:[#allocation0] sm:$0x1] %vm81, %v80
    %s83 = scalar_lea.vmem %s0, 2
    %v84 = vld [vmem:[%s83] sm:$0x1]
    %85 = vrot.lane.b32.xlu0 %v84, 16
    %v86 = vpop.permute.xlu0 %85
    %vm87 = vcmask 195712
    %88 = vst.msk [vmem:[#allocation0] sm:$0x1] %vm87, %v86
    %s89 = scalar_lea.vmem %s0, 1
    %v90 = vld [vmem:[%s89] sm:$0x1]
    %91 = vrot.lane.b32.xlu0 %v90, 8
    %v92 = vpop.permute.xlu0 %91
    %vm93 = vcmask 130112
    %94 = vst.msk [vmem:[#allocation0] sm:$0x1] %vm93, %v92
    %s96 = ssub.s32 2, 1
    %v97 = vld [vmem:[#allocation0] sm:%s96]
    %s99 = ssub.s32 2, 1
    %100 = vst [vmem:[%s1] sm:%s99] %v97

// kernel: tile.53
$region0: #{tile.53}
  #allocation0 [shape = 's32[1]{0}', space=sflag, size = 0x4, scoped, tag = 'scoped memory for tile.53']
  %s0 = inlined_call_operand.vmem [shape: f32[4], index: 0, kind: input, shape index: {}]
  %s1 = inlined_call_operand.vmem [shape: f32[16,4], index: 1, kind: output, shape index: {}]
  // Predicated region
  $region2: #{tile.53} parent=0 // pred_check
    _
  $region3: #{tile.53} parent=0 // pred_check_branch
    %3 = sbr.rel (0) target = $region5
  $region4: #{tile.53} parent=0 // pred_region
    _
  $region5: #{tile.53} parent=0 // pred_fallthru
    _
  %v4 = vld [vmem:[%s0] ss:$0 sm:$0xff]
  %5 = vst [vmem:[%s1] sm:$0xff] %v4
  %s6 = scalar_lea.vmem %s1, 8
  %7 = vst [vmem:[%s6] sm:$0xff] %v4

// kernel: tile.54
$region0: #{tile.54}
  %s0 = inlined_call_operand.vmem [shape: f32[16,4], index: 0, kind: input, shape index: {}]
  %s1 = inlined_call_operand.vmem [shape: f32[1,64], index: 1, kind: output, shape index: {}]
  $region1: #{tile.54} parent=0
    #allocation0 [shape = 'u8[4096]{0}', space=vmem, size = 0x1000, scoped, tag = 'scoped mem for output reshape']
    %v2 = vld [vmem:[%s0] sm:$0x1]
    %vm3 = vcmask 31744
    %4 = vst.msk [vmem:[#allocation0] sm:$0x1] %vm3, %v2
    %s5 = scalar_lea.vmem %s0, 15
    %v6 = vld [vmem:[%s5] sm:$0x1]
    %7 = vrot.lane.b32.xlu0 %v6, 60
    %v8 = vpop.permute.xlu0 %7
    %vm9 = vcmask 523744
    %10 = vst.msk [vmem:[#allocation0] sm:$0x1] %vm9, %v8
    %s11 = scalar_lea.vmem %s0, 14
    %v12 = vld [vmem:[%s11] sm:$0x1]
    %13 = vrot.lane.b32.xlu0 %v12, 56
    %v14 = vpop.permute.xlu0 %13
    %vm15 = vcmask 490944
    %16 = vst.msk [vmem:[#allocation0] sm:$0x1] %vm15, %v14
    %s17 = scalar_lea.vmem %s0, 13
    %v18 = vld [vmem:[%s17] sm:$0x1]
    %19 = vrot.lane.b32.xlu0 %v18, 52
    %v20 = vpop.permute.xlu0 %19
    %vm21 = vcmask 458144
    %22 = vst.msk [vmem:[#allocation0] sm:$0x1] %vm21, %v20
    %s23 = scalar_lea.vmem %s0, 12
    %v24 = vld [vmem:[%s23] sm:$0x1]
    %25 = vrot.lane.b32.xlu0 %v24, 48
    %v26 = vpop.permute.xlu0 %25
    %vm27 = vcmask 425344
    %28 = vst.msk [vmem:[#allocation0] sm:$0x1] %vm27, %v26
    %s29 = scalar_lea.vmem %s0, 11
    %v30 = vld [vmem:[%s29] sm:$0x1]
    %31 = vrot.lane.b32.xlu0 %v30, 44
    %v32 = vpop.permute.xlu0 %31
    %vm33 = vcmask 392544
    %34 = vst.msk [vmem:[#allocation0] sm:$0x1] %vm33, %v32
    %s35 = scalar_lea.vmem %s0, 10
    %v36 = vld [vmem:[%s35] sm:$0x1]
    %37 = vrot.lane.b32.xlu0 %v36, 40
    %v38 = vpop.permute.xlu0 %37
    %vm39 = vcmask 359744
    %40 = vst.msk [vmem:[#allocation0] sm:$0x1] %vm39, %v38
    %s41 = scalar_lea.vmem %s0, 9
    %v42 = vld [vmem:[%s41] sm:$0x1]
    %43 = vrot.lane.b32.xlu0 %v42, 36
    %v44 = vpop.permute.xlu0 %43
    %vm45 = vcmask 326944
    %46 = vst.msk [vmem:[#allocation0] sm:$0x1] %vm45, %v44
    %s47 = scalar_lea.vmem %s0, 8
    %v48 = vld [vmem:[%s47] sm:$0x1]
    %49 = vrot.lane.b32.xlu0 %v48, 32
    %v50 = vpop.permute.xlu0 %49
    %vm51 = vcmask 294144
    %52 = vst.msk [vmem:[#allocation0] sm:$0x1] %vm51, %v50
    %s53 = scalar_lea.vmem %s0, 7
    %v54 = vld [vmem:[%s53] sm:$0x1]
    %55 = vrot.lane.b32.xlu0 %v54, 28
    %v56 = vpop.permute.xlu0 %55
    %vm57 = vcmask 261344
    %58 = vst.msk [vmem:[#allocation0] sm:$0x1] %vm57, %v56
    %s59 = scalar_lea.vmem %s0, 6
    %v60 = vld [vmem:[%s59] sm:$0x1]
    %61 = vrot.lane.b32.xlu0 %v60, 24
    %v62 = vpop.permute.xlu0 %61
    %vm63 = vcmask 228544
    %64 = vst.msk [vmem:[#allocation0] sm:$0x1] %vm63, %v62
    %s65 = scalar_lea.vmem %s0, 5
    %v66 = vld [vmem:[%s65] sm:$0x1]
    %67 = vrot.lane.b32.xlu0 %v66, 20
    %v68 = vpop.permute.xlu0 %67
    %vm69 = vcmask 195744
    %70 = vst.msk [vmem:[#allocation0] sm:$0x1] %vm69, %v68
    %s71 = scalar_lea.vmem %s0, 4
    %v72 = vld [vmem:[%s71] sm:$0x1]
    %73 = vrot.lane.b32.xlu0 %v72, 16
    %v74 = vpop.permute.xlu0 %73
    %vm75 = vcmask 162944
    %76 = vst.msk [vmem:[#allocation0] sm:$0x1] %vm75, %v74
    %s77 = scalar_lea.vmem %s0, 3
    %v78 = vld [vmem:[%s77] sm:$0x1]
    %79 = vrot.lane.b32.xlu0 %v78, 12
    %v80 = vpop.permute.xlu0 %79
    %vm81 = vcmask 130144
    %82 = vst.msk [vmem:[#allocation0] sm:$0x1] %vm81, %v80
    %s83 = scalar_lea.vmem %s0, 2
    %v84 = vld [vmem:[%s83] sm:$0x1]
    %85 = vrot.lane.b32.xlu0 %v84, 8
    %v86 = vpop.permute.xlu0 %85
    %vm87 = vcmask 97344
    %88 = vst.msk [vmem:[#allocation0] sm:$0x1] %vm87, %v86
    %s89 = scalar_lea.vmem %s0, 1
    %v90 = vld [vmem:[%s89] sm:$0x1]
    %91 = vrot.lane.b32.xlu0 %v90, 4
    %v92 = vpop.permute.xlu0 %91
    %vm93 = vcmask 64544
    %94 = vst.msk [vmem:[#allocation0] sm:$0x1] %vm93, %v92
    %s96 = ssub.s32 2, 1
    %v97 = vld [vmem:[#allocation0] sm:%s96]
    %s99 = ssub.s32 2, 1
    %100 = vst [vmem:[%s1] sm:%s99] %v97

// kernel: down_res_block.1
$region0: #{down_res_block.1}
  #allocation0 [shape = 'u32[]', space=smem, size = 0x4, offset = 0x4, fixed_abs, tag = 'smem constant byte address 0x4 - core index']
  #allocation1 [shape = 'u32[72,128]{1,0:T(1,128)}', space=vmem, size = 0x9000, scoped, tag = 'internal scratch']
  #allocation2 [shape = 'f32[2,18,128]{2,1,0:T(8,128)}', space=vmem, size = 0x6000, scoped, tag = 'scratch operand']
  #allocation3 [shape = 'f32[8,128]{1,0:T(8,128)}', space=vmem, size = 0x1000, scoped, tag = 'scratch operand']
  %s0 = inlined_call_operand.vmem [shape: f32[32,64], index: 0, kind: input, shape index: {}]
  %s1 = inlined_call_operand.vmem [shape: bf16[3,64,128], index: 1, kind: input, shape index: {}]
  %s2 = inlined_call_operand.vmem [shape: bf16[3,128,128], index: 2, kind: input, shape index: {}]
  %s3 = inlined_call_operand.vmem [shape: bf16[64,128], index: 3, kind: input, shape index: {}]
  %s4 = inlined_call_operand.vmem [shape: f32[1,128], index: 4, kind: input, shape index: {}]
  %s5 = inlined_call_operand.vmem [shape: f32[1,128], index: 5, kind: input, shape index: {}]
  %s6 = inlined_call_operand.vmem [shape: f32[1,128], index: 6, kind: input, shape index: {}]
  %s7 = inlined_call_operand.vmem [shape: f32[1,64], index: 7, kind: input, shape index: {}]
  %s8 = inlined_call_operand.vmem [shape: f32[1,64], index: 8, kind: input, shape index: {}]
  %s9 = inlined_call_operand.vmem [shape: f32[1,128], index: 9, kind: input, shape index: {}]
  %s10 = inlined_call_operand.vmem [shape: f32[1,128], index: 10, kind: input, shape index: {}]
  %s11 = inlined_call_operand.vmem [shape: bf16[64,64], index: 11, kind: input, shape index: {}]
  %s12 = inlined_call_operand.vmem [shape: bf16[128,128], index: 12, kind: input, shape index: {}]
  %s13 = inlined_call_operand.vmem [shape: f32[32,128], index: 13, kind: output, shape index: {}]
  %s14 = sld [smem:[#allocation0]]
  $region62: #{down_res_block.1} parent=0
    _
  %s16 = ssub.s32 1, %s14
  %s17 = scalar_select 0, %s16, %s14
  // Predicated region
  $region2: #{down_res_block.1} parent=0 // pred_check
    _
  $region3: #{down_res_block.1} parent=0 // pred_check_branch
    %19 = sbr.rel (0) target = $region5
  $region4: #{down_res_block.1} parent=0 // pred_region
    _
  $region5: #{down_res_block.1} parent=0 // pred_fallthru
    _
  // Predicated region
  $region6: #{down_res_block.1} parent=0 // pred_check
    _
  $region7: #{down_res_block.1} parent=0 // pred_check_branch
    %21 = sbr.rel (0) target = $region9
  $region8: #{down_res_block.1} parent=0 // pred_region
    _
  $region9: #{down_res_block.1} parent=0 // pred_fallthru
    _
  // Predicated region
  $region10: #{down_res_block.1} parent=0 // pred_check
    _
  $region11: #{down_res_block.1} parent=0 // pred_check_branch
    %23 = sbr.rel (0) target = $region13
  $region12: #{down_res_block.1} parent=0 // pred_region
    _
  $region13: #{down_res_block.1} parent=0 // pred_fallthru
    _
  // Predicated region
  $region14: #{down_res_block.1} parent=0 // pred_check
    _
  $region15: #{down_res_block.1} parent=0 // pred_check_branch
    %25 = sbr.rel (0) target = $region17
  $region16: #{down_res_block.1} parent=0 // pred_region
    _
  $region17: #{down_res_block.1} parent=0 // pred_fallthru
    _
  // Predicated region
  $region18: #{down_res_block.1} parent=0 // pred_check
    _
  $region19: #{down_res_block.1} parent=0 // pred_check_branch
    %27 = sbr.rel (0) target = $region21
  $region20: #{down_res_block.1} parent=0 // pred_region
    _
  $region21: #{down_res_block.1} parent=0 // pred_fallthru
    _
  // Predicated region
  $region22: #{down_res_block.1} parent=0 // pred_check
    _
  $region23: #{down_res_block.1} parent=0 // pred_check_branch
    %29 = sbr.rel (0) target = $region25
  $region24: #{down_res_block.1} parent=0 // pred_region
    _
  $region25: #{down_res_block.1} parent=0 // pred_fallthru
    _
  // Predicated region
  $region26: #{down_res_block.1} parent=0 // pred_check
    _
  $region27: #{down_res_block.1} parent=0 // pred_check_branch
    %31 = sbr.rel (0) target = $region29
  $region28: #{down_res_block.1} parent=0 // pred_region
    _
  $region29: #{down_res_block.1} parent=0 // pred_fallthru
    _
  // Predicated region
  $region30: #{down_res_block.1} parent=0 // pred_check
    _
  $region31: #{down_res_block.1} parent=0 // pred_check_branch
    %33 = sbr.rel (0) target = $region33
  $region32: #{down_res_block.1} parent=0 // pred_region
    _
  $region33: #{down_res_block.1} parent=0 // pred_fallthru
    _
  // Predicated region
  $region34: #{down_res_block.1} parent=0 // pred_check
    _
  $region35: #{down_res_block.1} parent=0 // pred_check_branch
    %35 = sbr.rel (0) target = $region37
  $region36: #{down_res_block.1} parent=0 // pred_region
    _
  $region37: #{down_res_block.1} parent=0 // pred_fallthru
    _
  // Predicated region
  $region38: #{down_res_block.1} parent=0 // pred_check
    _
  $region39: #{down_res_block.1} parent=0 // pred_check_branch
    %37 = sbr.rel (0) target = $region41
  $region40: #{down_res_block.1} parent=0 // pred_region
    _
  $region41: #{down_res_block.1} parent=0 // pred_fallthru
    _
  // Predicated region
  $region42: #{down_res_block.1} parent=0 // pred_check
    _
  $region43: #{down_res_block.1} parent=0 // pred_check_branch
    %39 = sbr.rel (0) target = $region45
  $region44: #{down_res_block.1} parent=0 // pred_region
    _
  $region45: #{down_res_block.1} parent=0 // pred_fallthru
    _
  // Predicated region
  $region46: #{down_res_block.1} parent=0 // pred_check
    _
  $region47: #{down_res_block.1} parent=0 // pred_check_branch
    %41 = sbr.rel (0) target = $region49
  $region48: #{down_res_block.1} parent=0 // pred_region
    _
  $region49: #{down_res_block.1} parent=0 // pred_fallthru
    _
  // Predicated region
  $region50: #{down_res_block.1} parent=0 // pred_check
    _
  $region51: #{down_res_block.1} parent=0 // pred_check_branch
    %43 = sbr.rel (0) target = $region53
  $region52: #{down_res_block.1} parent=0 // pred_region
    _
  $region53: #{down_res_block.1} parent=0 // pred_fallthru
    _
  %45 = vst [vmem:[#allocation2] sm:$0x1] 0.0
  %46 = vst [vmem:[#allocation2 + $0x18] sm:$0x1] 0.0
  %47 = vst [vmem:[#allocation2 + $0x11] sm:$0x1] 0.0
  %48 = vst [vmem:[#allocation2 + $0x29] sm:$0x1] 0.0
  %v49 = vld [vmem:[%s0] sm:$0xff]
  %v50 = vld [vmem:[%s0 + $0x8] sm:$0xff]
  %v51 = vld [vmem:[%s0 + $0x10] sm:$0xff]
  %v52 = vld [vmem:[%s0 + $0x18] sm:$0xff]
  %vm53 = vcmask 523264
  %v54 = vsel %vm53, %v49, 0.0
  %v55 = vsel %vm53, %v50, 0.0
  %v56 = vadd.f32 %v54, %v55
  %v57 = vsel %vm53, %v51, 0.0
  %v58 = vadd.f32 %v56, %v57
  %v59 = vsel %vm53, %v52, 0.0
  %v60 = vadd.f32 %v58, %v59
  %v61 = vrot.slane %v60, 4
  %v62 = vadd.f32 %v60, %v61
  %v63 = vrot.slane %v62, 2
  %v64 = vadd.f32 %v62, %v63
  %v65 = vrot.slane %v64, 1
  %v66 = vadd.f32 %v64, %v65
  %v67 = vmul.f32 %v49, %v49
  %v68 = vmul.f32 %v50, %v50
  %v69 = vmul.f32 %v51, %v51
  %v70 = vmul.f32 %v52, %v52
  %v71 = vsel %vm53, %v67, 0.0
  %v72 = vsel %vm53, %v68, 0.0
  %v73 = vadd.f32 %v71, %v72
  %v74 = vsel %vm53, %v69, 0.0
  %v75 = vadd.f32 %v73, %v74
  %v76 = vsel %vm53, %v70, 0.0
  %v77 = vadd.f32 %v75, %v76
  %v78 = vrot.slane %v77, 4
  %v79 = vadd.f32 %v77, %v78
  %v80 = vrot.slane %v79, 2
  %v81 = vadd.f32 %v79, %v80
  %v82 = vrot.slane %v81, 1
  %v83 = vadd.f32 %v81, %v82
  %v84 = vpack.c.bf16 %v66, %v66
  %v85 = vunpack.c.l.bf16 %v84
  %v86 = vpack.c.bf16 %v83, %v83
  %v87 = vunpack.c.l.bf16 %v86
  %vm88 = vcmask 516096
  %89 = vst.msk [vmem:[#allocation3] sm:$0x1] %vm88, %v85
  %90 = vst.msk [vmem:[#allocation3 + $0x1] sm:$0x1] %vm88, %v87
  %v91 = vsub.f32 %v66, %v85
  %92 = vst.msk [vmem:[#allocation3 + $0x2] sm:$0x1] %vm88, %v91
  %v93 = vsub.f32 %v83, %v87
  %94 = vst.msk [vmem:[#allocation3 + $0x3] sm:$0x1] %vm88, %v93
  %v95 = vld [vmem:[#allocation3] sm:$0xf]
  %v96 = vpack.c.bf16 %v95, %v95
  %v97 = vld [vmem:[%s11] sm:$0xf]
  %v98 = vld [vmem:[%s11 + $0x4] sm:$0xf]
  %v99 = vld [vmem:[%s11 + $0x8] sm:$0xf]
  %v100 = vld [vmem:[%s11 + $0xc] sm:$0xf]
  %v101 = vld [vmem:[%s11 + $0x10] sm:$0xf]
  %v102 = vld [vmem:[%s11 + $0x14] sm:$0xf]
  %v103 = vld [vmem:[%s11 + $0x18] sm:$0xf]
  %v104 = vld [vmem:[%s11 + $0x1c] sm:$0xf]
  %v113 = vunpack.c.l.b16 %v97
  %v114 = vunpack.c.l.b16 %v98
  %v115 = vunpack.c.l.b16 %v99
  %v116 = vunpack.c.l.b16 %v100
  %v117 = vunpack.c.l.b16 %v101
  %v118 = vunpack.c.l.b16 %v102
  %v119 = vunpack.c.l.b16 %v103
  %v120 = vunpack.c.l.b16 %v104
  %v121 = vpack.c.b16 %v114, %v113
  %v122 = vpack.c.b16 %v116, %v115
  %v123 = vpack.c.b16 %v118, %v117
  %v124 = vpack.c.b16 %v120, %v119
  %v130 = vsel %vm53, %v96, 0
  %132 = vmatpush.bf16.msra.mxu0 0
  %133 = vmatpush.bf16.msra.mxu0 0
  %134 = vmatpush.bf16.msra.mxu0 0
  %135 = vmatpush.bf16.msra.mxu0 0
  %136 = vmatpush.bf16.msra.mxu0 %v124
  %137 = vmatpush.bf16.msra.mxu0 %v123
  %138 = vmatpush.bf16.msra.mxu0 %v122
  %139 = vmatpush.bf16.msra.mxu0 %v121
  %140 = vmatmul.bf16.gmra.mxu0 %v130
  %v141 = vpop.f32.mrf.mxu0
  %v142 = vadd.f32 0.0, %v141
  %v143 = vpop.f32.mrf.mxu0
  %144 = vdwg.mxu0
  %v146 = vrot.slane %v142, 2
  %v148 = vadd.f32 %v142, %v146
  %v149 = vmul.f32 %v148, 0.001953125
  %v150 = vmul.f32 %v149, %v149
  %v152 = vrot.slane %v150, 7
  %v154 = vsub.f32 %v149, %v152
  %v155 = vmax.f32 %v154, 0.0
  %v156 = vld [vmem:[%s7] sm:$0x1]
  %v157 = vadd.f32 %v155, 1e-05
  %v158 = vrsqrt.pop %v157
  %v159 = vmul.f32 %v158, %v157
  %v160 = vmul.f32 %v159, %v158
  %v161 = vmul.f32 0.5, %v160
  %v162 = vsub.f32 1.5, %v161
  %v163 = vmul.f32 %v158, %v162
  %vm164 = vweird.f32 %v157
  %vm165 = vweird.f32 %v158
  %vm166 = vmor %vm164, %vm165
  %v167 = vsel %vm166, %v158, %v163
  %169 = vst [vmem:[#allocation1] sm:$0xff] %v167
  %s170 = scalar_lea.vmem [#allocation1], 1
  %v171 = vld [vmem:[%s170] ss:$9 sm:$0xff]
  %v173 = vmul.f32 %v156, %v171
  %v174 = vld [vmem:[%s8] sm:$0x1]
  %v175 = vmul.f32 %v149, %v173
  %v176 = vsub.f32 %v174, %v175
  %v178 = vperm.slane %v173, 0
  %v180 = vmul.f32 %v49, %v178
  %v181 = vmul.f32 %v50, %v178
  %v182 = vmul.f32 %v51, %v178
  %v183 = vmul.f32 %v52, %v178
  %v185 = vperm.slane %v176, 0
  %v187 = vadd.f32 %v180, %v185
  %v188 = vadd.f32 %v181, %v185
  %v189 = vadd.f32 %v182, %v185
  %v190 = vadd.f32 %v183, %v185
  %v191 = vmax.f32 %v187, 0.0
  %v192 = vmax.f32 %v188, 0.0
  %v193 = vmax.f32 %v189, 0.0
  %v194 = vmax.f32 %v190, 0.0
  %195 = vst.msk [vmem:[#allocation2 + $0x1] sm:$0xff] %vm53, %v191
  %196 = vst.msk [vmem:[#allocation2 + $0x9] sm:$0xff] %vm53, %v192
  %197 = vst.msk [vmem:[#allocation2 + $0x19] sm:$0xff] %vm53, %v193
  %198 = vst.msk [vmem:[#allocation2 + $0x21] sm:$0xff] %vm53, %v194
  %v199 = vld [vmem:[#allocation2] sm:$0xff]
  %v200 = vld [vmem:[#allocation2 + $0x8] sm:$0xff]
  %v201 = vld [vmem:[#allocation2 + $0x18] sm:$0xff]
  %v202 = vld [vmem:[#allocation2 + $0x20] sm:$0xff]
  %v203 = vpack.c.bf16 %v200, %v199
  %v204 = vpack.c.bf16 %v202, %v201
  %v205 = vld [vmem:[%s1] sm:$0xf]
  %v206 = vld [vmem:[%s1 + $0x4] sm:$0xf]
  %v207 = vld [vmem:[%s1 + $0x8] sm:$0xf]
  %v208 = vld [vmem:[%s1 + $0xc] sm:$0xf]
  %v209 = vld [vmem:[%s1 + $0x10] sm:$0xf]
  %v210 = vld [vmem:[%s1 + $0x14] sm:$0xf]
  %v211 = vld [vmem:[%s1 + $0x18] sm:$0xf]
  %v212 = vld [vmem:[%s1 + $0x1c] sm:$0xf]
  %v213 = vld [vmem:[#allocation2 + $0x1] sm:$0xff]
  %v214 = vld [vmem:[#allocation2 + $0x9] sm:$0xff]
  %v215 = vld [vmem:[#allocation2 + $0x19] sm:$0xff]
  %v216 = vld [vmem:[#allocation2 + $0x21] sm:$0xff]
  %v217 = vpack.c.bf16 %v214, %v213
  %v218 = vpack.c.bf16 %v216, %v215
  %s219 = scalar_lea.vmem %s1, 32
  %v220 = vld [vmem:[%s219] sm:$0xf]
  %v221 = vld [vmem:[%s219 + $0x4] sm:$0xf]
  %v222 = vld [vmem:[%s219 + $0x8] sm:$0xf]
  %v223 = vld [vmem:[%s219 + $0xc] sm:$0xf]
  %v224 = vld [vmem:[%s219 + $0x10] sm:$0xf]
  %v225 = vld [vmem:[%s219 + $0x14] sm:$0xf]
  %v226 = vld [vmem:[%s219 + $0x18] sm:$0xf]
  %v227 = vld [vmem:[%s219 + $0x1c] sm:$0xf]
  %v236 = vunpack.c.l.b16 %v220
  %v237 = vunpack.c.l.b16 %v221
  %v238 = vunpack.c.l.b16 %v222
  %v239 = vunpack.c.l.b16 %v223
  %v240 = vunpack.c.l.b16 %v224
  %v241 = vunpack.c.l.b16 %v225
  %v242 = vunpack.c.l.b16 %v226
  %v243 = vunpack.c.l.b16 %v227
  %v244 = vpack.c.b16 %v237, %v236
  %v245 = vpack.c.b16 %v239, %v238
  %v246 = vpack.c.b16 %v241, %v240
  %v247 = vpack.c.b16 %v243, %v242
  %v253 = vsel %vm53, %v217, 0
  %v256 = vsel %vm53, %v218, 0
  %258 = vmatpush.bf16.msra.mxu0 0
  %259 = vmatpush.bf16.msra.mxu0 0
  %260 = vmatpush.bf16.msra.mxu0 0
  %261 = vmatpush.bf16.msra.mxu0 0
  %262 = vmatpush.bf16.msra.mxu0 %v247
  %263 = vmatpush.bf16.msra.mxu0 %v246
  %264 = vmatpush.bf16.msra.mxu0 %v245
  %265 = vmatpush.bf16.msra.mxu0 %v244
  %266 = vmatmul.bf16.gmra.mxu0 %v253
  %v267 = vpop.f32.mrf.mxu0
  %v268 = vadd.f32 0.0, %v267
  %v269 = vpop.f32.mrf.mxu0
  %v270 = vadd.f32 0.0, %v269
  %271 = vmatmul.bf16.gmra.mxu0 %v256
  %v272 = vpop.f32.mrf.mxu0
  %v273 = vadd.f32 0.0, %v272
  %v274 = vpop.f32.mrf.mxu0
  %v275 = vadd.f32 0.0, %v274
  %276 = vdwg.mxu0
  %v285 = vunpack.c.l.b16 %v205
  %v286 = vunpack.c.l.b16 %v206
  %v287 = vunpack.c.l.b16 %v207
  %v288 = vunpack.c.l.b16 %v208
  %v289 = vunpack.c.l.b16 %v209
  %v290 = vunpack.c.l.b16 %v210
  %v291 = vunpack.c.l.b16 %v211
  %v292 = vunpack.c.l.b16 %v212
  %v293 = vpack.c.b16 %v286, %v285
  %v294 = vpack.c.b16 %v288, %v287
  %v295 = vpack.c.b16 %v290, %v289
  %v296 = vpack.c.b16 %v292, %v291
  %v302 = vsel %vm53, %v203, 0
  %v305 = vsel %vm53, %v204, 0
  %307 = vmatpush.bf16.msra.mxu0 0
  %308 = vmatpush.bf16.msra.mxu0 0
  %309 = vmatpush.bf16.msra.mxu0 0
  %310 = vmatpush.bf16.msra.mxu0 0
  %311 = vmatpush.bf16.msra.mxu0 %v296
  %312 = vmatpush.bf16.msra.mxu0 %v295
  %313 = vmatpush.bf16.msra.mxu0 %v294
  %314 = vmatpush.bf16.msra.mxu0 %v293
  %315 = vmatmul.bf16.gmra.mxu0 %v302
  %v316 = vpop.f32.mrf.mxu0
  %v317 = vadd.f32 %v268, %v316
  %v318 = vpop.f32.mrf.mxu0
  %v319 = vadd.f32 %v270, %v318
  %320 = vmatmul.bf16.gmra.mxu0 %v305
  %v321 = vpop.f32.mrf.mxu0
  %v322 = vadd.f32 %v273, %v321
  %v323 = vpop.f32.mrf.mxu0
  %v324 = vadd.f32 %v275, %v323
  %325 = vdwg.mxu0
  %v326 = vld [vmem:[#allocation2 + $0x2] sm:$0xff]
  %v327 = vld [vmem:[#allocation2 + $0xa] sm:$0xff]
  %v328 = vld [vmem:[#allocation2 + $0x1a] sm:$0xff]
  %v329 = vld [vmem:[#allocation2 + $0x22] sm:$0xff]
  %v330 = vpack.c.bf16 %v327, %v326
  %v331 = vpack.c.bf16 %v329, %v328
  %s332 = scalar_lea.vmem %s1, 64
  %v333 = vld [vmem:[%s332] sm:$0xf]
  %v334 = vld [vmem:[%s332 + $0x4] sm:$0xf]
  %v335 = vld [vmem:[%s332 + $0x8] sm:$0xf]
  %v336 = vld [vmem:[%s332 + $0xc] sm:$0xf]
  %v337 = vld [vmem:[%s332 + $0x10] sm:$0xf]
  %v338 = vld [vmem:[%s332 + $0x14] sm:$0xf]
  %v339 = vld [vmem:[%s332 + $0x18] sm:$0xf]
  %v340 = vld [vmem:[%s332 + $0x1c] sm:$0xf]
  %v349 = vunpack.c.l.b16 %v333
  %v350 = vunpack.c.l.b16 %v334
  %v351 = vunpack.c.l.b16 %v335
  %v352 = vunpack.c.l.b16 %v336
  %v353 = vunpack.c.l.b16 %v337
  %v354 = vunpack.c.l.b16 %v338
  %v355 = vunpack.c.l.b16 %v339
  %v356 = vunpack.c.l.b16 %v340
  %v357 = vpack.c.b16 %v350, %v349
  %v358 = vpack.c.b16 %v352, %v351
  %v359 = vpack.c.b16 %v354, %v353
  %v360 = vpack.c.b16 %v356, %v355
  %v366 = vsel %vm53, %v330, 0
  %v369 = vsel %vm53, %v331, 0
  %371 = vmatpush.bf16.msra.mxu0 0
  %372 = vmatpush.bf16.msra.mxu0 0
  %373 = vmatpush.bf16.msra.mxu0 0
  %374 = vmatpush.bf16.msra.mxu0 0
  %375 = vmatpush.bf16.msra.mxu0 %v360
  %376 = vmatpush.bf16.msra.mxu0 %v359
  %377 = vmatpush.bf16.msra.mxu0 %v358
  %378 = vmatpush.bf16.msra.mxu0 %v357
  %379 = vmatmul.bf16.gmra.mxu0 %v366
  %v380 = vpop.f32.mrf.mxu0
  %v381 = vadd.f32 0.0, %v380
  %v382 = vpop.f32.mrf.mxu0
  %v383 = vadd.f32 0.0, %v382
  %384 = vmatmul.bf16.gmra.mxu0 %v369
  %v385 = vpop.f32.mrf.mxu0
  %v386 = vadd.f32 0.0, %v385
  %v387 = vpop.f32.mrf.mxu0
  %v388 = vadd.f32 0.0, %v387
  %389 = vdwg.mxu0
  %v390 = vadd.f32 %v317, %v381
  %v391 = vadd.f32 %v319, %v383
  %v392 = vadd.f32 %v322, %v386
  %v393 = vadd.f32 %v324, %v388
  %v394 = vld [vmem:[%s4] sm:$0x1]
  %v396 = vperm.slane %v394, 0
  %v398 = vadd.f32 %v390, %v396
  %v399 = vadd.f32 %v391, %v396
  %v400 = vadd.f32 %v392, %v396
  %v401 = vadd.f32 %v393, %v396
  %v402 = vadd.f32 %v398, %v399
  %v403 = vadd.f32 %v402, %v400
  %v404 = vadd.f32 %v403, %v401
  %v405 = vrot.slane %v404, 4
  %v406 = vadd.f32 %v404, %v405
  %v407 = vrot.slane %v406, 2
  %v408 = vadd.f32 %v406, %v407
  %v409 = vrot.slane %v408, 1
  %v410 = vadd.f32 %v408, %v409
  %v411 = vmul.f32 %v398, %v398
  %v412 = vmul.f32 %v399, %v399
  %v413 = vmul.f32 %v400, %v400
  %v414 = vmul.f32 %v401, %v401
  %v415 = vadd.f32 %v411, %v412
  %v416 = vadd.f32 %v415, %v413
  %v417 = vadd.f32 %v416, %v414
  %v418 = vrot.slane %v417, 4
  %v419 = vadd.f32 %v417, %v418
  %v420 = vrot.slane %v419, 2
  %v421 = vadd.f32 %v419, %v420
  %v422 = vrot.slane %v421, 1
  %v423 = vadd.f32 %v421, %v422
  %v424 = vpack.c.bf16 %v410, %v410
  %v425 = vunpack.c.l.bf16 %v424
  %v426 = vpack.c.bf16 %v423, %v423
  %v427 = vunpack.c.l.bf16 %v426
  %428 = vst [vmem:[#allocation3] sm:$0x1] %v425
  %429 = vst [vmem:[#allocation3 + $0x1] sm:$0x1] %v427
  %v430 = vsub.f32 %v410, %v425
  %431 = vst [vmem:[#allocation3 + $0x2] sm:$0x1] %v430
  %v432 = vsub.f32 %v423, %v427
  %433 = vst [vmem:[#allocation3 + $0x3] sm:$0x1] %v432
  %v434 = vld [vmem:[#allocation3] sm:$0xf]
  %v435 = vpack.c.bf16 %v434, %v434
  %v436 = vld [vmem:[%s12] sm:$0xf]
  %v437 = vld [vmem:[%s12 + $0x4] sm:$0xf]
  %v438 = vld [vmem:[%s12 + $0x8] sm:$0xf]
  %v439 = vld [vmem:[%s12 + $0xc] sm:$0xf]
  %v440 = vld [vmem:[%s12 + $0x10] sm:$0xf]
  %v441 = vld [vmem:[%s12 + $0x14] sm:$0xf]
  %v442 = vld [vmem:[%s12 + $0x18] sm:$0xf]
  %v443 = vld [vmem:[%s12 + $0x1c] sm:$0xf]
  %v444 = vld [vmem:[%s12 + $0x20] sm:$0xf]
  %v445 = vld [vmem:[%s12 + $0x24] sm:$0xf]
  %v446 = vld [vmem:[%s12 + $0x28] sm:$0xf]
  %v447 = vld [vmem:[%s12 + $0x2c] sm:$0xf]
  %v448 = vld [vmem:[%s12 + $0x30] sm:$0xf]
  %v449 = vld [vmem:[%s12 + $0x34] sm:$0xf]
  %v450 = vld [vmem:[%s12 + $0x38] sm:$0xf]
  %v451 = vld [vmem:[%s12 + $0x3c] sm:$0xf]
  %v468 = vunpack.c.l.b16 %v436
  %v469 = vunpack.c.l.b16 %v437
  %v470 = vunpack.c.l.b16 %v438
  %v471 = vunpack.c.l.b16 %v439
  %v472 = vunpack.c.l.b16 %v440
  %v473 = vunpack.c.l.b16 %v441
  %v474 = vunpack.c.l.b16 %v442
  %v475 = vunpack.c.l.b16 %v443
  %v476 = vunpack.c.l.b16 %v444
  %v477 = vunpack.c.l.b16 %v445
  %v478 = vunpack.c.l.b16 %v446
  %v479 = vunpack.c.l.b16 %v447
  %v480 = vunpack.c.l.b16 %v448
  %v481 = vunpack.c.l.b16 %v449
  %v482 = vunpack.c.l.b16 %v450
  %v483 = vunpack.c.l.b16 %v451
  %v484 = vpack.c.b16 %v469, %v468
  %v485 = vpack.c.b16 %v471, %v470
  %v486 = vpack.c.b16 %v473, %v472
  %v487 = vpack.c.b16 %v475, %v474
  %v488 = vpack.c.b16 %v477, %v476
  %v489 = vpack.c.b16 %v479, %v478
  %v490 = vpack.c.b16 %v481, %v480
  %v491 = vpack.c.b16 %v483, %v482
  %500 = vmatpush.bf16.msra.mxu0 %v491
  %501 = vmatpush.bf16.msra.mxu0 %v490
  %502 = vmatpush.bf16.msra.mxu0 %v489
  %503 = vmatpush.bf16.msra.mxu0 %v488
  %504 = vmatpush.bf16.msra.mxu0 %v487
  %505 = vmatpush.bf16.msra.mxu0 %v486
  %506 = vmatpush.bf16.msra.mxu0 %v485
  %507 = vmatpush.bf16.msra.mxu0 %v484
  %508 = vmatmul.bf16.gmra.mxu0 %v435
  %v509 = vpop.f32.mrf.mxu0
  %v510 = vadd.f32 0.0, %v509
  %v511 = vpop.f32.mrf.mxu0
  %512 = vdwg.mxu0
  %v514 = vrot.slane %v510, 2
  %v516 = vadd.f32 %v510, %v514
  %v517 = vmul.f32 %v516, 0.001953125
  %v518 = vmul.f32 %v517, %v517
  %v520 = vrot.slane %v518, 7
  %v522 = vsub.f32 %v517, %v520
  %v523 = vmax.f32 %v522, 0.0
  %v524 = vld [vmem:[%s9] sm:$0x1]
  %v525 = vadd.f32 %v523, 1e-05
  %v526 = vrsqrt.pop %v525
  %v527 = vmul.f32 %v526, %v525
  %v528 = vmul.f32 %v527, %v526
  %v529 = vmul.f32 0.5, %v528
  %v530 = vsub.f32 1.5, %v529
  %v531 = vmul.f32 %v526, %v530
  %vm532 = vweird.f32 %v525
  %vm533 = vweird.f32 %v526
  %vm534 = vmor %vm532, %vm533
  %v535 = vsel %vm534, %v526, %v531
  %537 = vst [vmem:[#allocation1] sm:$0xff] %v535
  %s538 = scalar_lea.vmem [#allocation1], 1
  %v539 = vld [vmem:[%s538] ss:$9 sm:$0xff]
  %v541 = vmul.f32 %v524, %v539
  %v542 = vld [vmem:[%s10] sm:$0x1]
  %v543 = vmul.f32 %v517, %v541
  %v544 = vsub.f32 %v542, %v543
  %v546 = vperm.slane %v541, 0
  %v548 = vmul.f32 %v398, %v546
  %v549 = vmul.f32 %v399, %v546
  %v550 = vmul.f32 %v400, %v546
  %v551 = vmul.f32 %v401, %v546
  %v553 = vperm.slane %v544, 0
  %v555 = vadd.f32 %v548, %v553
  %v556 = vadd.f32 %v549, %v553
  %v557 = vadd.f32 %v550, %v553
  %v558 = vadd.f32 %v551, %v553
  %v559 = vmax.f32 %v555, 0.0
  %v560 = vmax.f32 %v556, 0.0
  %v561 = vmax.f32 %v557, 0.0
  %v562 = vmax.f32 %v558, 0.0
  %563 = vst [vmem:[#allocation2 + $0x1] sm:$0xff] %v559
  %564 = vst [vmem:[#allocation2 + $0x9] sm:$0xff] %v560
  %565 = vst [vmem:[#allocation2 + $0x19] sm:$0xff] %v561
  %566 = vst [vmem:[#allocation2 + $0x21] sm:$0xff] %v562
  %v567 = vld [vmem:[#allocation2] sm:$0xff]
  %v568 = vld [vmem:[#allocation2 + $0x8] sm:$0xff]
  %v569 = vld [vmem:[#allocation2 + $0x18] sm:$0xff]
  %v570 = vld [vmem:[#allocation2 + $0x20] sm:$0xff]
  %v571 = vpack.c.bf16 %v568, %v567
  %v572 = vpack.c.bf16 %v570, %v569
  %v573 = vld [vmem:[%s2] sm:$0xf]
  %v574 = vld [vmem:[%s2 + $0x4] sm:$0xf]
  %v575 = vld [vmem:[%s2 + $0x8] sm:$0xf]
  %v576 = vld [vmem:[%s2 + $0xc] sm:$0xf]
  %v577 = vld [vmem:[%s2 + $0x10] sm:$0xf]
  %v578 = vld [vmem:[%s2 + $0x14] sm:$0xf]
  %v579 = vld [vmem:[%s2 + $0x18] sm:$0xf]
  %v580 = vld [vmem:[%s2 + $0x1c] sm:$0xf]
  %v581 = vld [vmem:[%s2 + $0x20] sm:$0xf]
  %v582 = vld [vmem:[%s2 + $0x24] sm:$0xf]
  %v583 = vld [vmem:[%s2 + $0x28] sm:$0xf]
  %v584 = vld [vmem:[%s2 + $0x2c] sm:$0xf]
  %v585 = vld [vmem:[%s2 + $0x30] sm:$0xf]
  %v586 = vld [vmem:[%s2 + $0x34] sm:$0xf]
  %v587 = vld [vmem:[%s2 + $0x38] sm:$0xf]
  %v588 = vld [vmem:[%s2 + $0x3c] sm:$0xf]
  %v589 = vld [vmem:[#allocation2 + $0x1] sm:$0xff]
  %v590 = vld [vmem:[#allocation2 + $0x9] sm:$0xff]
  %v591 = vld [vmem:[#allocation2 + $0x19] sm:$0xff]
  %v592 = vld [vmem:[#allocation2 + $0x21] sm:$0xff]
  %v593 = vpack.c.bf16 %v590, %v589
  %v594 = vpack.c.bf16 %v592, %v591
  %s595 = scalar_lea.vmem %s2, 64
  %v596 = vld [vmem:[%s595] sm:$0xf]
  %v597 = vld [vmem:[%s595 + $0x4] sm:$0xf]
  %v598 = vld [vmem:[%s595 + $0x8] sm:$0xf]
  %v599 = vld [vmem:[%s595 + $0xc] sm:$0xf]
  %v600 = vld [vmem:[%s595 + $0x10] sm:$0xf]
  %v601 = vld [vmem:[%s595 + $0x14] sm:$0xf]
  %v602 = vld [vmem:[%s595 + $0x18] sm:$0xf]
  %v603 = vld [vmem:[%s595 + $0x1c] sm:$0xf]
  %v604 = vld [vmem:[%s595 + $0x20] sm:$0xf]
  %v605 = vld [vmem:[%s595 + $0x24] sm:$0xf]
  %v606 = vld [vmem:[%s595 + $0x28] sm:$0xf]
  %v607 = vld [vmem:[%s595 + $0x2c] sm:$0xf]
  %v608 = vld [vmem:[%s595 + $0x30] sm:$0xf]
  %v609 = vld [vmem:[%s595 + $0x34] sm:$0xf]
  %v610 = vld [vmem:[%s595 + $0x38] sm:$0xf]
  %v611 = vld [vmem:[%s595 + $0x3c] sm:$0xf]
  %v628 = vunpack.c.l.b16 %v596
  %v629 = vunpack.c.l.b16 %v597
  %v630 = vunpack.c.l.b16 %v598
  %v631 = vunpack.c.l.b16 %v599
  %v632 = vunpack.c.l.b16 %v600
  %v633 = vunpack.c.l.b16 %v601
  %v634 = vunpack.c.l.b16 %v602
  %v635 = vunpack.c.l.b16 %v603
  %v636 = vunpack.c.l.b16 %v604
  %v637 = vunpack.c.l.b16 %v605
  %v638 = vunpack.c.l.b16 %v606
  %v639 = vunpack.c.l.b16 %v607
  %v640 = vunpack.c.l.b16 %v608
  %v641 = vunpack.c.l.b16 %v609
  %v642 = vunpack.c.l.b16 %v610
  %v643 = vunpack.c.l.b16 %v611
  %v644 = vpack.c.b16 %v629, %v628
  %v645 = vpack.c.b16 %v631, %v630
  %v646 = vpack.c.b16 %v633, %v632
  %v647 = vpack.c.b16 %v635, %v634
  %v648 = vpack.c.b16 %v637, %v636
  %v649 = vpack.c.b16 %v639, %v638
  %v650 = vpack.c.b16 %v641, %v640
  %v651 = vpack.c.b16 %v643, %v642
  %660 = vmatpush.bf16.msra.mxu0 %v651
  %661 = vmatpush.bf16.msra.mxu0 %v650
  %662 = vmatpush.bf16.msra.mxu0 %v649
  %663 = vmatpush.bf16.msra.mxu0 %v648
  %664 = vmatpush.bf16.msra.mxu0 %v647
  %665 = vmatpush.bf16.msra.mxu0 %v646
  %666 = vmatpush.bf16.msra.mxu0 %v645
  %667 = vmatpush.bf16.msra.mxu0 %v644
  %668 = vmatmul.bf16.gmra.mxu0 %v593
  %v669 = vpop.f32.mrf.mxu0
  %v670 = vadd.f32 0.0, %v669
  %v671 = vpop.f32.mrf.mxu0
  %v672 = vadd.f32 0.0, %v671
  %673 = vmatmul.bf16.gmra.mxu0 %v594
  %v674 = vpop.f32.mrf.mxu0
  %v675 = vadd.f32 0.0, %v674
  %v676 = vpop.f32.mrf.mxu0
  %v677 = vadd.f32 0.0, %v676
  %678 = vdwg.mxu0
  %v695 = vunpack.c.l.b16 %v573
  %v696 = vunpack.c.l.b16 %v574
  %v697 = vunpack.c.l.b16 %v575
  %v698 = vunpack.c.l.b16 %v576
  %v699 = vunpack.c.l.b16 %v577
  %v700 = vunpack.c.l.b16 %v578
  %v701 = vunpack.c.l.b16 %v579
  %v702 = vunpack.c.l.b16 %v580
  %v703 = vunpack.c.l.b16 %v581
  %v704 = vunpack.c.l.b16 %v582
  %v705 = vunpack.c.l.b16 %v583
  %v706 = vunpack.c.l.b16 %v584
  %v707 = vunpack.c.l.b16 %v585
  %v708 = vunpack.c.l.b16 %v586
  %v709 = vunpack.c.l.b16 %v587
  %v710 = vunpack.c.l.b16 %v588
  %v711 = vpack.c.b16 %v696, %v695
  %v712 = vpack.c.b16 %v698, %v697
  %v713 = vpack.c.b16 %v700, %v699
  %v714 = vpack.c.b16 %v702, %v701
  %v715 = vpack.c.b16 %v704, %v703
  %v716 = vpack.c.b16 %v706, %v705
  %v717 = vpack.c.b16 %v708, %v707
  %v718 = vpack.c.b16 %v710, %v709
  %727 = vmatpush.bf16.msra.mxu0 %v718
  %728 = vmatpush.bf16.msra.mxu0 %v717
  %729 = vmatpush.bf16.msra.mxu0 %v716
  %730 = vmatpush.bf16.msra.mxu0 %v715
  %731 = vmatpush.bf16.msra.mxu0 %v714
  %732 = vmatpush.bf16.msra.mxu0 %v713
  %733 = vmatpush.bf16.msra.mxu0 %v712
  %734 = vmatpush.bf16.msra.mxu0 %v711
  %735 = vmatmul.bf16.gmra.mxu0 %v571
  %v736 = vpop.f32.mrf.mxu0
  %v737 = vadd.f32 %v670, %v736
  %v738 = vpop.f32.mrf.mxu0
  %v739 = vadd.f32 %v672, %v738
  %740 = vmatmul.bf16.gmra.mxu0 %v572
  %v741 = vpop.f32.mrf.mxu0
  %v742 = vadd.f32 %v675, %v741
  %v743 = vpop.f32.mrf.mxu0
  %v744 = vadd.f32 %v677, %v743
  %745 = vdwg.mxu0
  %v746 = vld [vmem:[#allocation2 + $0x2] sm:$0xff]
  %v747 = vld [vmem:[#allocation2 + $0xa] sm:$0xff]
  %v748 = vld [vmem:[#allocation2 + $0x1a] sm:$0xff]
  %v749 = vld [vmem:[#allocation2 + $0x22] sm:$0xff]
  %v750 = vpack.c.bf16 %v747, %v746
  %v751 = vpack.c.bf16 %v749, %v748
  %s752 = scalar_lea.vmem %s2, 128
  %v753 = vld [vmem:[%s752] sm:$0xf]
  %v754 = vld [vmem:[%s752 + $0x4] sm:$0xf]
  %v755 = vld [vmem:[%s752 + $0x8] sm:$0xf]
  %v756 = vld [vmem:[%s752 + $0xc] sm:$0xf]
  %v757 = vld [vmem:[%s752 + $0x10] sm:$0xf]
  %v758 = vld [vmem:[%s752 + $0x14] sm:$0xf]
  %v759 = vld [vmem:[%s752 + $0x18] sm:$0xf]
  %v760 = vld [vmem:[%s752 + $0x1c] sm:$0xf]
  %v761 = vld [vmem:[%s752 + $0x20] sm:$0xf]
  %v762 = vld [vmem:[%s752 + $0x24] sm:$0xf]
  %v763 = vld [vmem:[%s752 + $0x28] sm:$0xf]
  %v764 = vld [vmem:[%s752 + $0x2c] sm:$0xf]
  %v765 = vld [vmem:[%s752 + $0x30] sm:$0xf]
  %v766 = vld [vmem:[%s752 + $0x34] sm:$0xf]
  %v767 = vld [vmem:[%s752 + $0x38] sm:$0xf]
  %v768 = vld [vmem:[%s752 + $0x3c] sm:$0xf]
  %v785 = vunpack.c.l.b16 %v753
  %v786 = vunpack.c.l.b16 %v754
  %v787 = vunpack.c.l.b16 %v755
  %v788 = vunpack.c.l.b16 %v756
  %v789 = vunpack.c.l.b16 %v757
  %v790 = vunpack.c.l.b16 %v758
  %v791 = vunpack.c.l.b16 %v759
  %v792 = vunpack.c.l.b16 %v760
  %v793 = vunpack.c.l.b16 %v761
  %v794 = vunpack.c.l.b16 %v762
  %v795 = vunpack.c.l.b16 %v763
  %v796 = vunpack.c.l.b16 %v764
  %v797 = vunpack.c.l.b16 %v765
  %v798 = vunpack.c.l.b16 %v766
  %v799 = vunpack.c.l.b16 %v767
  %v800 = vunpack.c.l.b16 %v768
  %v801 = vpack.c.b16 %v786, %v785
  %v802 = vpack.c.b16 %v788, %v787
  %v803 = vpack.c.b16 %v790, %v789
  %v804 = vpack.c.b16 %v792, %v791
  %v805 = vpack.c.b16 %v794, %v793
  %v806 = vpack.c.b16 %v796, %v795
  %v807 = vpack.c.b16 %v798, %v797
  %v808 = vpack.c.b16 %v800, %v799
  %817 = vmatpush.bf16.msra.mxu0 %v808
  %818 = vmatpush.bf16.msra.mxu0 %v807
  %819 = vmatpush.bf16.msra.mxu0 %v806
  %820 = vmatpush.bf16.msra.mxu0 %v805
  %821 = vmatpush.bf16.msra.mxu0 %v804
  %822 = vmatpush.bf16.msra.mxu0 %v803
  %823 = vmatpush.bf16.msra.mxu0 %v802
  %824 = vmatpush.bf16.msra.mxu0 %v801
  %825 = vmatmul.bf16.gmra.mxu0 %v750
  %v826 = vpop.f32.mrf.mxu0
  %v827 = vadd.f32 0.0, %v826
  %v828 = vpop.f32.mrf.mxu0
  %v829 = vadd.f32 0.0, %v828
  %830 = vmatmul.bf16.gmra.mxu0 %v751
  %v831 = vpop.f32.mrf.mxu0
  %v832 = vadd.f32 0.0, %v831
  %v833 = vpop.f32.mrf.mxu0
  %v834 = vadd.f32 0.0, %v833
  %835 = vdwg.mxu0
  %v836 = vadd.f32 %v737, %v827
  %v837 = vadd.f32 %v739, %v829
  %v838 = vadd.f32 %v742, %v832
  %v839 = vadd.f32 %v744, %v834
  %v840 = vld [vmem:[%s5] sm:$0x1]
  %v842 = vperm.slane %v840, 0
  %v844 = vadd.f32 %v836, %v842
  %v845 = vadd.f32 %v837, %v842
  %v846 = vadd.f32 %v838, %v842
  %v847 = vadd.f32 %v839, %v842
  %v848 = vld [vmem:[%s0] sm:$0xff]
  %v849 = vld [vmem:[%s0 + $0x8] sm:$0xff]
  %v850 = vld [vmem:[%s0 + $0x10] sm:$0xff]
  %v851 = vld [vmem:[%s0 + $0x18] sm:$0xff]
  %v852 = vpack.c.bf16 %v849, %v848
  %v853 = vpack.c.bf16 %v851, %v850
  %v854 = vld [vmem:[%s3] sm:$0xf]
  %v855 = vld [vmem:[%s3 + $0x4] sm:$0xf]
  %v856 = vld [vmem:[%s3 + $0x8] sm:$0xf]
  %v857 = vld [vmem:[%s3 + $0xc] sm:$0xf]
  %v858 = vld [vmem:[%s3 + $0x10] sm:$0xf]
  %v859 = vld [vmem:[%s3 + $0x14] sm:$0xf]
  %v860 = vld [vmem:[%s3 + $0x18] sm:$0xf]
  %v861 = vld [vmem:[%s3 + $0x1c] sm:$0xf]
  %v862 = vld [vmem:[%s6] sm:$0x1]
  %v864 = vperm.slane %v862, 0
  %v874 = vunpack.c.l.b16 %v854
  %v875 = vunpack.c.l.b16 %v855
  %v876 = vunpack.c.l.b16 %v856
  %v877 = vunpack.c.l.b16 %v857
  %v878 = vunpack.c.l.b16 %v858
  %v879 = vunpack.c.l.b16 %v859
  %v880 = vunpack.c.l.b16 %v860
  %v881 = vunpack.c.l.b16 %v861
  %v882 = vpack.c.b16 %v875, %v874
  %v883 = vpack.c.b16 %v877, %v876
  %v884 = vpack.c.b16 %v879, %v878
  %v885 = vpack.c.b16 %v881, %v880
  %v891 = vsel %vm53, %v852, 0
  %v894 = vsel %vm53, %v853, 0
  %896 = vmatpush.bf16.msra.mxu0 0
  %897 = vmatpush.bf16.msra.mxu0 0
  %898 = vmatpush.bf16.msra.mxu0 0
  %899 = vmatpush.bf16.msra.mxu0 0
  %900 = vmatpush.bf16.msra.mxu0 %v885
  %901 = vmatpush.bf16.msra.mxu0 %v884
  %902 = vmatpush.bf16.msra.mxu0 %v883
  %903 = vmatpush.bf16.msra.mxu0 %v882
  %904 = vmatmul.bf16.gmra.mxu0 %v891
  %v905 = vpop.f32.mrf.mxu0
  %v906 = vadd.f32 %v864, %v905
  %v907 = vpop.f32.mrf.mxu0
  %v908 = vadd.f32 %v864, %v907
  %909 = vmatmul.bf16.gmra.mxu0 %v894
  %v910 = vpop.f32.mrf.mxu0
  %v911 = vadd.f32 %v864, %v910
  %v912 = vpop.f32.mrf.mxu0
  %v913 = vadd.f32 %v864, %v912
  %914 = vdwg.mxu0
  %v915 = vadd.f32 %v844, %v906
  %v916 = vadd.f32 %v845, %v908
  %v917 = vadd.f32 %v846, %v911
  %v918 = vadd.f32 %v847, %v913
  %919 = vst [vmem:[%s13] sm:$0xff] %v915
  %920 = vst [vmem:[%s13 + $0x8] sm:$0xff] %v916
  %921 = vst [vmem:[%s13 + $0x10] sm:$0xff] %v917
  %922 = vst [vmem:[%s13 + $0x18] sm:$0xff] %v918
  // Predicated region
  $region54: #{down_res_block.1} parent=0 // pred_check
    _
  $region55: #{down_res_block.1} parent=0 // pred_check_branch
    %924 = sbr.rel (0) target = $region57
  $region56: #{down_res_block.1} parent=0 // pred_region
    _
  $region57: #{down_res_block.1} parent=0 // pred_fallthru
    _
  // Predicated region
  $region58: #{down_res_block.1} parent=0 // pred_check
    _
  $region59: #{down_res_block.1} parent=0 // pred_check_branch
    %926 = sbr.rel (0) target = $region61
  $region60: #{down_res_block.1} parent=0 // pred_region
    _
  $region61: #{down_res_block.1} parent=0 // pred_fallthru
    _

</llo_original>
